<compile_context>
chip_gen: v7x
topology: tpu7x:2x2x1
jax: 0.10.0
libtpu: 0.0.40
codegen_flags: <defaults>
</compile_context>

<pallas_src>
import functools

import jax
import jax.numpy as jnp
from jax.experimental import pallas as pl
from jax.experimental.pallas import tpu as pltpu


def _pad_feature_dim(f):
    """128-pad small feature dims; 256-align larger ones (v6e/v7x 2x256 MXU)."""
    fp = pl.cdiv(f, 128) * 128
    if fp > 128:
        fp = pl.cdiv(f, 256) * 256
    return fp


def _pick_tiles(n):
    """Output-node tile (tile_i) and reduction tile (tile_k); multiples of 128."""
    n128 = pl.cdiv(n, 128) * 128
    if n128 >= 1024:
        tile_i = 512      # cuts xs re-streaming 4x, amortizes per-step overhead,
    elif n128 >= 512:     # and still leaves >= 2 output tiles (v7x: 2 TensorCores)
        tile_i = 256
    else:
        tile_i = 128
    tile_k = 256 if n128 >= 512 else 128   # 256-wide K feeds the v6e/v7x MXU fully
    return tile_i, tile_k


def _vmem_block_bytes(shape, itemsize):
    """Bytes of one VMEM-resident block, padded to (8, 128) tiling."""
    dims = list(shape)
    dims[-1] = pl.cdiv(dims[-1], 128) * 128
    if len(dims) > 1:
        dims[-2] = pl.cdiv(dims[-2], 8) * 8
    n = 1
    for d in dims:
        n *= d
    return n * itemsize


def sage_conv_kernel(a_ref, xs_ref, xd_ref, inv_ref, wa_ref, wl_ref, o_ref, acc_ref):
    k = pl.program_id(1)

    @pl.when(k == 0)
    def _():
        acc_ref[...] = jnp.zeros_like(acc_ref)

    # Neighbor-sum for this tile of target nodes: acc += adj[i, k] @ x[k]
    # bf16 operands -> native MXU pass; accumulation stays f32.
    acc_ref[...] += jnp.dot(a_ref[...], xs_ref[...],
                            preferred_element_type=jnp.float32)

    @pl.when(k == pl.num_programs(1) - 1)
    def _():
        # Mean aggregation: inv_deg kept f32 so the mean is exact even though the
        # streamed adjacency counts are bf16 (exact for multiplicities <= 256).
        agg_mean = (acc_ref[...] * inv_ref[...]).astype(jnp.bfloat16)
        # Fused projection as two dots on separate pre-transposed weights
        # (no [TI, 2*FinP] concat temporary; the MXU accumulates).
        h = jnp.dot(agg_mean, wa_ref[...], preferred_element_type=jnp.float32)
        h = h + jnp.dot(xd_ref[...], wl_ref[...], preferred_element_type=jnp.float32)
        # F.normalize(h, p=2, dim=-1) == h / max(||h||, 1e-12); rsqrt -> EUP slot.
        sumsq = jnp.sum(h * h, axis=-1, keepdims=True)
        o_ref[...] = h * jax.lax.rsqrt(jnp.maximum(sumsq, 1e-24))


@functools.partial(jax.jit, static_argnames=("normalize",))
def custom_sage_conv(x, edge_index, w_lin, w_agg, normalize=True):
    """x: [N, Fin] f32, edge_index: [2, E] int, weights: [Fout, Fin] (nn.Linear)."""
    assert normalize, "kernel implements the normalize=True path of CustomSAGEConv"
    N, Fin = x.shape
    Fout = w_lin.shape[0]

    tile_i, tile_k = _pick_tiles(N)
    tile_lcm = max(tile_i, tile_k)
    Np = pl.cdiv(N, tile_lcm) * tile_lcm
    FinP = _pad_feature_dim(Fin)
    FoutP = _pad_feature_dim(Fout)

    row = edge_index[0].astype(jnp.int32)
    col = edge_index[1].astype(jnp.int32)

    # --- edge-index-only preprocessing (hoisted out of the kernel) -----------
    # Built in f32 (duplicate edges accumulate exactly), streamed as bf16.
    adj = jnp.zeros((Np, Np), jnp.float32).at[col, row].add(1.0).astype(jnp.bfloat16)
    deg = jnp.zeros((Np,), jnp.float32).at[col].add(1.0)
    inv_deg = (1.0 / jnp.maximum(deg, 1.0)).reshape(Np, 1)          # f32, clamp(min=1)

    # Lane-dense, zero-padded bf16 features.
    xp = jnp.pad(x.astype(jnp.float32),
                 ((0, Np - N), (0, FinP - Fin))).astype(jnp.bfloat16)

    # Pre-transposed, zero-padded bf16 weights (two inputs -> no in-kernel concat).
    wa = jnp.zeros((FinP, FoutP), jnp.float32).at[:Fin, :Fout].set(
        w_agg.astype(jnp.float32).T).astype(jnp.bfloat16)
    wl = jnp.zeros((FinP, FoutP), jnp.float32).at[:Fin, :Fout].set(
        w_lin.astype(jnp.float32).T).astype(jnp.bfloat16)

    grid = (Np // tile_i, Np // tile_k)

    # VMEM budget derived from the actual tiles (double buffers where applicable),
    # capped at v7x's 64 MiB physical VMEM per TensorCore.
    vmem_need = (
        2 * _vmem_block_bytes((tile_i, tile_k), 2)     # adj, double-buffered bf16
        + 2 * _vmem_block_bytes((tile_k, FinP), 2)     # xs, double-buffered bf16
        + 2 * _vmem_block_bytes((tile_i, FinP), 2)     # xd, double-buffered bf16
        + 2 * _vmem_block_bytes((tile_i, 1), 4)        # inv_deg, double-buffered f32
        + 2 * _vmem_block_bytes((FinP, FoutP), 2)      # wa + wl, single-buffered bf16
        + 2 * _vmem_block_bytes((tile_i, FoutP), 4)    # out, double-buffered f32
        + 1 * _vmem_block_bytes((tile_i, FinP), 4)     # f32 accumulator scratch
    )
    vmem_limit = int(min(max(vmem_need * 3 // 2 + (2 << 20), 16 << 20), 64 << 20))

    single = pl.Buffered(1)  # weights never change across the grid: one buffer is enough

    out = pl.pallas_call(
        sage_conv_kernel,
        out_shape=jax.ShapeDtypeStruct((Np, FoutP), jnp.float32),
        grid_spec=pltpu.PrefetchScalarGridSpec(
            num_scalar_prefetch=0,
            grid=grid,
            in_specs=[
                pl.BlockSpec((tile_i, tile_k), lambda i, k: (i, k)),   # adjacency tile
                pl.BlockSpec((tile_k, FinP), lambda i, k: (k, 0)),     # x (source nodes)
                pl.BlockSpec((tile_i, FinP), lambda i, k: (i, 0)),     # x (target/self)
                pl.BlockSpec((tile_i, 1), lambda i, k: (i, 0)),        # inverse degrees (f32)
                pl.BlockSpec((FinP, FoutP), lambda i, k: (0, 0),
                             pipeline_mode=single),                    # W_agg^T (bf16)
                pl.BlockSpec((FinP, FoutP), lambda i, k: (0, 0),
                             pipeline_mode=single),                    # W_lin^T (bf16)
            ],
            out_specs=pl.BlockSpec((tile_i, FoutP), lambda i, k: (i, 0)),
            scratch_shapes=[pltpu.VMEM((tile_i, FinP), jnp.float32)],
        ),
        compiler_params=pltpu.CompilerParams(
            dimension_semantics=("parallel", "arbitrary"),
            vmem_limit_bytes=vmem_limit,
        ),
    )(adj, xp, xp, inv_deg, wa, wl)

    return out[:N, :Fout]


def _reference(x, edge_index, w_lin, w_agg):
    # pure-JAX f32 reference mirroring the PyTorch forward
    row, col = edge_index[0], edge_index[1]
    N = x.shape[0]
    src = x[row]                                               # [E, Fin]
    agg = jnp.zeros((N, x.shape[1]), jnp.float32).at[col].add(src)
    cnt = jnp.zeros((N, x.shape[1]), jnp.float32).at[col].add(jnp.ones_like(src))
    agg = agg / jnp.maximum(cnt, 1.0)
    out = agg @ w_agg.T + x @ w_lin.T
    nrm = jnp.sqrt(jnp.sum(out * out, axis=-1, keepdims=True))
    return out / jnp.maximum(nrm, 1e-12)


if __name__ == "__main__":
    key = jax.random.PRNGKey(0)
    # Small, but multi-tile: Np = 256 -> grid (2, 2); exercises the reduction
    # accumulator, i-varying input streams, and padded-row slice-off.
    N, Fin, Fout, E = 200, 24, 40, 600

    k_x, k_e0, k_e1, k_w, k_wa = jax.random.split(key, 5)
    x = jax.random.normal(k_x, (N, Fin), dtype=jnp.float32)
    edge_index = jnp.stack(
        [jax.random.randint(k_e0, (E,), 0, N, dtype=jnp.int32),
         jax.random.randint(k_e1, (E,), 0, N, dtype=jnp.int32)], axis=0)

    # nn.Linear(in, out, bias=False) default init: U(-1/sqrt(in), 1/sqrt(in))
    bound = 1.0 / (Fin ** 0.5)
    w_lin = jax.random.uniform(k_w, (Fout, Fin), jnp.float32, -bound, bound)
    w_agg = jax.random.uniform(k_wa, (Fout, Fin), jnp.float32, -bound, bound)

    out = custom_sage_conv(x, edge_index, w_lin, w_agg)
    out = jax.block_until_ready(out)

    ref = _reference(x, edge_index, w_lin, w_agg)
    assert out.shape == (N, Fout)
    # bf16-streamed operands (adj / x / weights) -> tolerance loosened vs an
    # all-f32 build; accumulation and the mean/normalize epilogue remain f32.
    err = float(jnp.max(jnp.abs(out - ref)))
    assert jnp.allclose(out, ref, atol=2e-2, rtol=2e-2), err
    print("KERNEL_OK")
</pallas_src>

<mosaic_0001>
module attributes {stable_mosaic.version = 11 : i64} {
  func.func @sage_conv_kernel(%arg0: i32, %arg1: i32, %arg2: memref<128x128xbf16, #tpu.memory_space<vmem>>, %arg3: memref<128x128xbf16, #tpu.memory_space<vmem>>, %arg4: memref<128x128xbf16, #tpu.memory_space<vmem>>, %arg5: memref<128x1xf32, #tpu.memory_space<vmem>>, %arg6: memref<128x128xbf16, #tpu.memory_space<vmem>>, %arg7: memref<128x128xbf16, #tpu.memory_space<vmem>>, %arg8: memref<128x128xf32, #tpu.memory_space<vmem>>, %arg9: memref<128x128xf32, #tpu.memory_space<vmem>>) attributes {dimension_semantics = [#tpu.dimension_semantics<parallel>, #tpu.dimension_semantics<arbitrary>], iteration_bounds = array<i64: 2, 2>, scalar_prefetch = 0 : i64, scratch_operands = 1 : i64, tpu.core_type = #tpu.core_type<tc>, window_params = [{transform_indices = @transform_0, window_bounds = array<i64: 128, 128>}, {transform_indices = @transform_1, window_bounds = array<i64: 128, 128>}, {transform_indices = @transform_2, window_bounds = array<i64: 128, 128>}, {transform_indices = @transform_3, window_bounds = array<i64: 128, 1>}, {pipeline_mode = #tpu.pipeline_mode<synchronous>, transform_indices = @transform_4, window_bounds = array<i64: 128, 128>}, {pipeline_mode = #tpu.pipeline_mode<synchronous>, transform_indices = @transform_5, window_bounds = array<i64: 128, 128>}, {transform_indices = @transform_6, window_bounds = array<i64: 128, 128>}]} {
    %c0_i32 = arith.constant 0 : i32
    %0 = arith.cmpi eq, %arg1, %c0_i32 : i32
    %1 = arith.extui %0 : i1 to i32
    %c0_i32_0 = arith.constant 0 : i32
    %2 = arith.cmpi ne, %1, %c0_i32_0 : i32
    scf.if %2 {
      %cst_9 = arith.constant 0.000000e+00 : f32
      %12 = vector.broadcast %cst_9 : f32 to vector<128x128xf32>
      %c0_10 = arith.constant 0 : index
      %c0_11 = arith.constant 0 : index
      %13 = vector.load %arg9[%c0_10, %c0_11] : memref<128x128xf32, #tpu.memory_space<vmem>>, vector<128x128xf32>
      tpu.vector_store %arg9[%c0_10, %c0_11], %12 {strides = array<i32>} : memref<128x128xf32, #tpu.memory_space<vmem>>, vector<128x128xf32>,
    } else {
    }
    %c0 = arith.constant 0 : index
    %c0_1 = arith.constant 0 : index
    %3 = vector.load %arg9[%c0, %c0_1] : memref<128x128xf32, #tpu.memory_space<vmem>>, vector<128x128xf32>
    %c0_2 = arith.constant 0 : index
    %c0_3 = arith.constant 0 : index
    %4 = vector.load %arg2[%c0_2, %c0_3] : memref<128x128xbf16, #tpu.memory_space<vmem>>, vector<128x128xbf16>
    %c0_4 = arith.constant 0 : index
    %c0_5 = arith.constant 0 : index
    %5 = vector.load %arg3[%c0_4, %c0_5] : memref<128x128xbf16, #tpu.memory_space<vmem>>, vector<128x128xbf16>
    %cst = arith.constant dense<0.000000e+00> : vector<128x128xf32>
    %6 = tpu.matmul %4, %5, %cst {dimension_numbers = #tpu.dot_dimension_numbers<[1], [0], [0], [1], [0, 0, 1, 1], [], []>} : vector<128x128xbf16>, vector<128x128xbf16>, vector<128x128xf32> -> vector<128x128xf32>
    %7 = arith.addf %3, %6 : vector<128x128xf32>
    %c0_6 = arith.constant 0 : index
    %c0_7 = arith.constant 0 : index
    %8 = vector.load %arg9[%c0_6, %c0_7] : memref<128x128xf32, #tpu.memory_space<vmem>>, vector<128x128xf32>
    tpu.vector_store %arg9[%c0_6, %c0_7], %7 {strides = array<i32>} : memref<128x128xf32, #tpu.memory_space<vmem>>, vector<128x128xf32>,
    %c1_i32 = arith.constant 1 : i32
    %9 = arith.cmpi eq, %arg1, %c1_i32 : i32
    %10 = arith.extui %9 : i1 to i32
    %c0_i32_8 = arith.constant 0 : i32
    %11 = arith.cmpi ne, %10, %c0_i32_8 : i32
    scf.if %11 {
      %c0_9 = arith.constant 0 : index
      %c0_10 = arith.constant 0 : index
      %12 = vector.load %arg9[%c0_9, %c0_10] : memref<128x128xf32, #tpu.memory_space<vmem>>, vector<128x128xf32>
      %c0_11 = arith.constant 0 : index
      %c0_12 = arith.constant 0 : index
      %13 = vector.load %arg5[%c0_11, %c0_12] : memref<128x1xf32, #tpu.memory_space<vmem>>, vector<128x1xf32>
      %14 = vector.broadcast %13 : vector<128x1xf32> to vector<128x128xf32>
      %15 = arith.mulf %12, %14 : vector<128x128xf32>
      %16 = arith.truncf %15 : vector<128x128xf32> to vector<128x128xbf16>
      %c0_13 = arith.constant 0 : index
      %c0_14 = arith.constant 0 : index
      %17 = vector.load %arg6[%c0_13, %c0_14] : memref<128x128xbf16, #tpu.memory_space<vmem>>, vector<128x128xbf16>
      %cst_15 = arith.constant dense<0.000000e+00> : vector<128x128xf32>
      %18 = tpu.matmul %16, %17, %cst_15 {dimension_numbers = #tpu.dot_dimension_numbers<[1], [0], [0], [1], [0, 0, 1, 1], [], []>} : vector<128x128xbf16>, vector<128x128xbf16>, vector<128x128xf32> -> vector<128x128xf32>
      %c0_16 = arith.constant 0 : index
      %c0_17 = arith.constant 0 : index
      %19 = vector.load %arg4[%c0_16, %c0_17] : memref<128x128xbf16, #tpu.memory_space<vmem>>, vector<128x128xbf16>
      %c0_18 = arith.constant 0 : index
      %c0_19 = arith.constant 0 : index
      %20 = vector.load %arg7[%c0_18, %c0_19] : memref<128x128xbf16, #tpu.memory_space<vmem>>, vector<128x128xbf16>
      %cst_20 = arith.constant dense<0.000000e+00> : vector<128x128xf32>
      %21 = tpu.matmul %19, %20, %cst_20 {dimension_numbers = #tpu.dot_dimension_numbers<[1], [0], [0], [1], [0, 0, 1, 1], [], []>} : vector<128x128xbf16>, vector<128x128xbf16>, vector<128x128xf32> -> vector<128x128xf32>
      %22 = arith.addf %18, %21 : vector<128x128xf32>
      %23 = arith.mulf %22, %22 : vector<128x128xf32>
      %cst_21 = arith.constant dense<0.000000e+00> : vector<128xf32>
      %24 = vector.multi_reduction <add>, %23, %cst_21 [1] : vector<128x128xf32> to vector<128xf32>
      %25 = vector.shape_cast %24 : vector<128xf32> to vector<128x1xf32>
      %cst_22 = arith.constant 1.000000e-24 : f32
      %26 = vector.broadcast %cst_22 : f32 to vector<128x1xf32>
      %27 = arith.maximumf %25, %26 : vector<128x1xf32>
      %28 = math.rsqrt %27 : vector<128x1xf32>
      %29 = vector.broadcast %28 : vector<128x1xf32> to vector<128x128xf32>
      %30 = arith.mulf %22, %29 : vector<128x128xf32>
      %c0_23 = arith.constant 0 : index
      %c0_24 = arith.constant 0 : index
      %31 = vector.load %arg8[%c0_23, %c0_24] : memref<128x128xf32, #tpu.memory_space<vmem>>, vector<128x128xf32>
      tpu.vector_store %arg8[%c0_23, %c0_24], %30 {strides = array<i32>} : memref<128x128xf32, #tpu.memory_space<vmem>>, vector<128x128xf32>,
    } else {
    }
    return
  }
  func.func @transform_0(%arg0: i32, %arg1: i32) -> (i32, i32) {
    %c0_i32 = arith.constant 0 : i32
    return %arg0, %arg1 : i32, i32
  }
  func.func @transform_1(%arg0: i32, %arg1: i32) -> (i32, i32) {
    %c0_i32 = arith.constant 0 : i32
    %c0_i32_0 = arith.constant 0 : i32
    return %arg1, %c0_i32 : i32, i32
  }
  func.func @transform_2(%arg0: i32, %arg1: i32) -> (i32, i32) {
    %c0_i32 = arith.constant 0 : i32
    %c0_i32_0 = arith.constant 0 : i32
    return %arg0, %c0_i32 : i32, i32
  }
  func.func @transform_3(%arg0: i32, %arg1: i32) -> (i32, i32) {
    %c0_i32 = arith.constant 0 : i32
    %c0_i32_0 = arith.constant 0 : i32
    return %arg0, %c0_i32 : i32, i32
  }
  func.func @transform_4(%arg0: i32, %arg1: i32) -> (i32, i32) {
    %c0_i32 = arith.constant 0 : i32
    %c0_i32_0 = arith.constant 0 : i32
    %c0_i32_1 = arith.constant 0 : i32
    return %c0_i32, %c0_i32_0 : i32, i32
  }
  func.func @transform_5(%arg0: i32, %arg1: i32) -> (i32, i32) {
    %c0_i32 = arith.constant 0 : i32
    %c0_i32_0 = arith.constant 0 : i32
    %c0_i32_1 = arith.constant 0 : i32
    return %c0_i32, %c0_i32_0 : i32, i32
  }
  func.func @transform_6(%arg0: i32, %arg1: i32) -> (i32, i32) {
    %c0_i32 = arith.constant 0 : i32
    %c0_i32_0 = arith.constant 0 : i32
    return %arg0, %c0_i32 : i32, i32
  }
}

</mosaic_0001>

<llo_original>
// kernel: custom_sage_conv.1
$region0: #{custom_sage_conv.1}
  #allocation0 [shape = 'u32[]', space=smem, size = 0x4, offset = 0x4, fixed_abs, tag = 'smem constant byte address 0x4 - core index']
  #allocation1 [shape = 'u32[144,128]{1,0:T(1,128)}', space=vmem, size = 0x12000, scoped, tag = 'internal scratch']
  #allocation2 [shape = 'f32[128,128]{1,0:T(8,128)}', space=vmem, size = 0x10000, scoped, tag = 'scratch operand']
  %s0 = inlined_call_operand.vmem [shape: bf16[256,256], index: 0, kind: input, shape index: {}]
  %s1 = inlined_call_operand.vmem [shape: bf16[256,128], index: 1, kind: input, shape index: {}, may-alias: {1,2}]
  %s2 = inlined_call_operand.vmem [shape: bf16[256,128], index: 2, kind: input, shape index: {}, may-alias: {1,2}]
  %s3 = inlined_call_operand.vmem [shape: f32[256,1], index: 3, kind: input, shape index: {}]
  %s4 = inlined_call_operand.vmem [shape: bf16[128,128], index: 4, kind: input, shape index: {}]
  %s5 = inlined_call_operand.vmem [shape: bf16[128,128], index: 5, kind: input, shape index: {}]
  %s6 = inlined_call_operand.vmem [shape: f32[256,128], index: 6, kind: output, shape index: {}]
  %s7 = sld [smem:[#allocation0]]
  $region106: #{custom_sage_conv.1} parent=0
    _
  %s9 = ssub.s32 1, %s7
  %s10 = scalar_select 0, %s9, %s7
  $region1: #{custom_sage_conv.1} parent=0
    #allocation3 [shape = 'u8[65536]{0}', space=vmem, size = 0x10000, scoped, tag = 'input window, operand 0']
    loop: start=0, step=1, limit=6
    $region2: #{custom_sage_conv.1} parent=1 // loop_pre_header
      _
    $region3: #{custom_sage_conv.1} parent=1 // loop_header
      %s12 = sphi 0, %s16
      %p13 = scmp.ge.s32.totalorder %s12, 6
      %s19 = sphi 0, %s31
      %s20 = sphi 0, %s27
      %s21 = sphi 0, %s19
      %s22 = sphi 0, %s20
      %s23 = sphi 0, %s21
      %s24 = sphi 0, %s22
      %s36 = sphi 0, %s38
      %s39 = sphi 0, %s36
      %s40 = sphi 0, %s39
      %s56 = sphi 0, %s40
      %s62 = sphi 0, %s64
      %s65 = sphi 0, %s62
      %s66 = sphi 0, %s65
      %s82 = sphi 0, %s66
      %s88 = sphi 0, %s90
      %s91 = sphi 0, %s88
      %s92 = sphi 0, %s91
      %s108 = sphi 0, %s92
      %s114 = sphi 0, %s116
      %s117 = sphi 0, %s114
      %s118 = sphi 0, %s117
      %s134 = sphi 0, %s118
      %s138 = sphi 0, %s138
      %s140 = sphi 0, %s138
      %s141 = sphi 0, %s140
      %s155 = sphi 0, %s141
      %s159 = sphi 0, %s159
      %s161 = sphi 0, %s159
      %s162 = sphi 0, %s161
      %s176 = sphi 0, %s162
      %s182 = sphi 0, %s184
      %s185 = sphi 0, %s182
      %s186 = sphi 0, %s185
      %s202 = sphi 0, %s186
    $region4: #{custom_sage_conv.1} parent=1 // loop_header_branch
      %15 = sbr.rel (%p13) target = $region8
    $region5: #{custom_sage_conv.1} parent=1 // loop_body
      %s17 = ssub.s32 %s12, 1
      %s18 = ssub.s32 %s12, 2
      %s25 = sadd.s32 1, %s20
      %p26 = scmp.ge.s32.totalorder %s25, 2
      %s27 = scalar_select %p26, 0, %s25
      %s28 = sadd.s32 1, %s19
      %s29 = scalar_select %p26, %s28, %s19
      %p30 = scmp.ge.s32.totalorder %s29, 2
      %s31 = scalar_select %p30, 0, %s29
      %s32 = ssub.s32 %s19, %s31
      %s33 = ssub.s32 %s20, %s27
      %s34 = sor.u32 %s32, %s33
      %p35 = scmp.eq.s32.totalorder %s34, 0
      %s37 = sadd.s32 %s36, 1
      %s38 = scalar_select %p35, %s36, %s37
      %p41 = pneg %p35
      %p42 = scmp.eq.s32.totalorder %s12, 3
      %p43 = por %p41, %p42
      %p44 = scmp.ne.s32.totalorder %s36, %s39
      %p45 = scmp.eq.s32.totalorder %s12, 0
      %p46 = por %p44, %p45
      %p47 = scmp.ne.s32.totalorder %s36, %s39
      %p48 = scmp.eq.s32.totalorder %s17, 3
      %p49 = por %p47, %p48
      %p50 = scmp.ne.s32.totalorder %s39, %s40
      %p51 = scmp.eq.s32.totalorder %s17, 0
      %p52 = por %p50, %p51
      %p53 = scmp.ne.s32.totalorder %s39, %s40
      %p54 = scmp.eq.s32.totalorder %s18, 3
      %p55 = por %p53, %p54
      %p57 = scmp.ne.s32.totalorder %s40, %s56
      %p58 = scmp.eq.s32.totalorder %s18, 0
      %p59 = por %p57, %p58
      %s60 = ssub.s32 %s20, %s27
      %p61 = scmp.eq.s32.totalorder %s60, 0
      %s63 = sadd.s32 %s62, 1
      %s64 = scalar_select %p61, %s62, %s63
      %p67 = pneg %p61
      %p68 = scmp.eq.s32.totalorder %s12, 3
      %p69 = por %p67, %p68
      %p70 = scmp.ne.s32.totalorder %s62, %s65
      %p71 = scmp.eq.s32.totalorder %s12, 0
      %p72 = por %p70, %p71
      %p73 = scmp.ne.s32.totalorder %s62, %s65
      %p74 = scmp.eq.s32.totalorder %s17, 3
      %p75 = por %p73, %p74
      %p76 = scmp.ne.s32.totalorder %s65, %s66
      %p77 = scmp.eq.s32.totalorder %s17, 0
      %p78 = por %p76, %p77
      %p79 = scmp.ne.s32.totalorder %s65, %s66
      %p80 = scmp.eq.s32.totalorder %s18, 3
      %p81 = por %p79, %p80
      %p83 = scmp.ne.s32.totalorder %s66, %s82
      %p84 = scmp.eq.s32.totalorder %s18, 0
      %p85 = por %p83, %p84
      %s86 = ssub.s32 %s19, %s31
      %p87 = scmp.eq.s32.totalorder %s86, 0
      %s89 = sadd.s32 %s88, 1
      %s90 = scalar_select %p87, %s88, %s89
      %p93 = pneg %p87
      %p94 = scmp.eq.s32.totalorder %s12, 3
      %p95 = por %p93, %p94
      %p96 = scmp.ne.s32.totalorder %s88, %s91
      %p97 = scmp.eq.s32.totalorder %s12, 0
      %p98 = por %p96, %p97
      %p99 = scmp.ne.s32.totalorder %s88, %s91
      %p100 = scmp.eq.s32.totalorder %s17, 3
      %p101 = por %p99, %p100
      %p102 = scmp.ne.s32.totalorder %s91, %s92
      %p103 = scmp.eq.s32.totalorder %s17, 0
      %p104 = por %p102, %p103
      %p105 = scmp.ne.s32.totalorder %s91, %s92
      %p106 = scmp.eq.s32.totalorder %s18, 3
      %p107 = por %p105, %p106
      %p109 = scmp.ne.s32.totalorder %s92, %s108
      %p110 = scmp.eq.s32.totalorder %s18, 0
      %p111 = por %p109, %p110
      %s112 = ssub.s32 %s19, %s31
      %p113 = scmp.eq.s32.totalorder %s112, 0
      %s115 = sadd.s32 %s114, 1
      %s116 = scalar_select %p113, %s114, %s115
      %p119 = pneg %p113
      %p120 = scmp.eq.s32.totalorder %s12, 3
      %p121 = por %p119, %p120
      %p122 = scmp.ne.s32.totalorder %s114, %s117
      %p123 = scmp.eq.s32.totalorder %s12, 0
      %p124 = por %p122, %p123
      %p125 = scmp.ne.s32.totalorder %s114, %s117
      %p126 = scmp.eq.s32.totalorder %s17, 3
      %p127 = por %p125, %p126
      %p128 = scmp.ne.s32.totalorder %s117, %s118
      %p129 = scmp.eq.s32.totalorder %s17, 0
      %p130 = por %p128, %p129
      %p131 = scmp.ne.s32.totalorder %s117, %s118
      %p132 = scmp.eq.s32.totalorder %s18, 3
      %p133 = por %p131, %p132
      %p135 = scmp.ne.s32.totalorder %s118, %s134
      %p136 = scmp.eq.s32.totalorder %s18, 0
      %p137 = por %p135, %p136
      %s139 = sadd.s32 %s138, 1
      %p142 = scmp.eq.s32.totalorder %s12, 3
      %p143 = scmp.ne.s32.totalorder %s138, %s140
      %p144 = scmp.eq.s32.totalorder %s12, 0
      %p145 = por %p143, %p144
      %p146 = scmp.ne.s32.totalorder %s138, %s140
      %p147 = scmp.eq.s32.totalorder %s17, 3
      %p148 = por %p146, %p147
      %p149 = scmp.ne.s32.totalorder %s140, %s141
      %p150 = scmp.eq.s32.totalorder %s17, 0
      %p151 = por %p149, %p150
      %p152 = scmp.ne.s32.totalorder %s140, %s141
      %p153 = scmp.eq.s32.totalorder %s18, 3
      %p154 = por %p152, %p153
      %p156 = scmp.ne.s32.totalorder %s141, %s155
      %p157 = scmp.eq.s32.totalorder %s18, 0
      %p158 = por %p156, %p157
      %s160 = sadd.s32 %s159, 1
      %p163 = scmp.eq.s32.totalorder %s12, 3
      %p164 = scmp.ne.s32.totalorder %s159, %s161
      %p165 = scmp.eq.s32.totalorder %s12, 0
      %p166 = por %p164, %p165
      %p167 = scmp.ne.s32.totalorder %s159, %s161
      %p168 = scmp.eq.s32.totalorder %s17, 3
      %p169 = por %p167, %p168
      %p170 = scmp.ne.s32.totalorder %s161, %s162
      %p171 = scmp.eq.s32.totalorder %s17, 0
      %p172 = por %p170, %p171
      %p173 = scmp.ne.s32.totalorder %s161, %s162
      %p174 = scmp.eq.s32.totalorder %s18, 3
      %p175 = por %p173, %p174
      %p177 = scmp.ne.s32.totalorder %s162, %s176
      %p178 = scmp.eq.s32.totalorder %s18, 0
      %p179 = por %p177, %p178
      %s180 = ssub.s32 %s19, %s31
      %p181 = scmp.eq.s32.totalorder %s180, 0
      %s183 = sadd.s32 %s182, 1
      %s184 = scalar_select %p181, %s182, %s183
      %p187 = pneg %p181
      %p188 = scmp.eq.s32.totalorder %s12, 3
      %p189 = por %p187, %p188
      %p190 = scmp.ne.s32.totalorder %s182, %s185
      %p191 = scmp.eq.s32.totalorder %s12, 0
      %p192 = por %p190, %p191
      %p193 = scmp.ne.s32.totalorder %s182, %s185
      %p194 = scmp.eq.s32.totalorder %s17, 3
      %p195 = por %p193, %p194
      %p196 = scmp.ne.s32.totalorder %s185, %s186
      %p197 = scmp.eq.s32.totalorder %s17, 0
      %p198 = por %p196, %p197
      %p199 = scmp.ne.s32.totalorder %s185, %s186
      %p200 = scmp.eq.s32.totalorder %s18, 3
      %p201 = por %p199, %p200
      %p203 = scmp.ne.s32.totalorder %s186, %s202
      %p204 = scmp.eq.s32.totalorder %s18, 0
      %p205 = por %p203, %p204
      %p206 = scmp.le.s32.totalorder 1, %s12
      %p207 = scmp.lt.s32.totalorder %s12, 5
      %p208 = pnand %p206, %p207
      %p209 = pneg %p208
      // Predicated region
      $region9: #{custom_sage_conv.1} parent=5 // pred_check
        _
      $region10: #{custom_sage_conv.1} parent=5 // pred_check_branch
        %211 = sbr.rel (%p208) target = $region12
      $region11: #{custom_sage_conv.1} parent=5 // pred_region
        %s212 = ssub.s32 %s12, 1
        // Predicated region
        $region13: #{custom_sage_conv.1} parent=11 // pred_check
          %p213 = pneg %p151
        $region14: #{custom_sage_conv.1} parent=11 // pred_check_branch
          %215 = sbr.rel (%p213) target = $region16
        $region15: #{custom_sage_conv.1} parent=11 // pred_region
          _
        $region16: #{custom_sage_conv.1} parent=11 // pred_fallthru
          _
        // Predicated region
        $region17: #{custom_sage_conv.1} parent=11 // pred_check
          %p216 = pneg %p172
        $region18: #{custom_sage_conv.1} parent=11 // pred_check_branch
          %218 = sbr.rel (%p216) target = $region20
        $region19: #{custom_sage_conv.1} parent=11 // pred_region
          _
        $region20: #{custom_sage_conv.1} parent=11 // pred_fallthru
          _
      $region12: #{custom_sage_conv.1} parent=5 // pred_fallthru
        _
      %p219 = scmp.lt.s32.totalorder %s12, 4
      // Predicated region
      $region21: #{custom_sage_conv.1} parent=5 // pred_check
        %p220 = pneg %p219
      $region22: #{custom_sage_conv.1} parent=5 // pred_check_branch
        %222 = sbr.rel (%p220) target = $region24
      $region23: #{custom_sage_conv.1} parent=5 // pred_region
        // Predicated region
        $region25: #{custom_sage_conv.1} parent=23 // pred_check
          %p223 = pneg %p46
        $region26: #{custom_sage_conv.1} parent=23 // pred_check_branch
          %225 = sbr.rel (%p223) target = $region28
        $region27: #{custom_sage_conv.1} parent=23 // pred_region
          %s226 = sand.u32 %s36, 1
          %s227 = sand.u32 %s36, 1
          %s228 = smul.addr %s227, 64
          %s229 = scalar_lea.vmem [#allocation3], %s228
          %s230 = smul.u32 16, %s19
          %s231 = smul.addr %s230, 2
          %s232 = sadd.s32 %s20, %s231
          %s233 = smul.addr %s232, 4
          %s234 = scalar_lea.vmem %s0, %s233
          // Predicated region
          $region29: #{custom_sage_conv.1} parent=27 // pred_check
            _
          $region30: #{custom_sage_conv.1} parent=27 // pred_check_branch
            %236 = sbr.rel (0) target = $region32
          $region31: #{custom_sage_conv.1} parent=27 // pred_region
            // Predicated region
            $region33: #{custom_sage_conv.1} parent=31 // pred_check
              _
            $region34: #{custom_sage_conv.1} parent=31 // pred_check_branch
              %238 = sbr.rel target = $region36
            $region35: #{custom_sage_conv.1} parent=31 // pred_region
              // Predicated region
              $region48: #{custom_sage_conv.1} parent=35 // pred_check
                _
              $region49: #{custom_sage_conv.1} parent=35 // pred_check_branch
                %283 = sbr.rel (0) target = $region51
              $region50: #{custom_sage_conv.1} parent=35 // pred_region
                loop: start=0, step=1, limit=1
                $region52: #{custom_sage_conv.1} parent=50 // loop_pre_header
                  _
                $region53: #{custom_sage_conv.1} parent=50 // loop_header
                  %s285 = sphi 0, %s289
                  %p286 = scmp.ge.s32.totalorder %s285, 1
                  %s290 = sphi %s234, %s234
                  %s291 = sphi %s229, %s229
                $region54: #{custom_sage_conv.1} parent=50 // loop_header_branch
                  %288 = sbr.rel (%p286) target = $region58
                $region55: #{custom_sage_conv.1} parent=50 // loop_body
                  _
                $region56: #{custom_sage_conv.1} parent=50 // loop_footer
                  %s289 = sadd.s32 1, %s285
                $region57: #{custom_sage_conv.1} parent=50 // loop_footer_branch
                  %284 = sbr.rel target = $region53
                $region58: #{custom_sage_conv.1} parent=50 // loop_exit
                  _
                loop: start=0, step=1, limit=1
                $region59: #{custom_sage_conv.1} parent=50 // loop_pre_header
                  _
                $region60: #{custom_sage_conv.1} parent=50 // loop_header
                  %s294 = sphi 0, %s298
                  %p295 = scmp.ge.s32.totalorder %s294, 1
                  %s299 = sphi %s234, %s234
                  %s300 = sphi %s229, %s229
                $region61: #{custom_sage_conv.1} parent=50 // loop_header_branch
                  %297 = sbr.rel (%p295) target = $region65
                $region62: #{custom_sage_conv.1} parent=50 // loop_body
                  %v301 = vld [vmem:[%s299] sm:$0xf]
                  %302 = vst [vmem:[%s300] sm:$0xf] %v301
                  %v303 = vld [vmem:[%s299 + $0x8] sm:$0xf]
                  %304 = vst [vmem:[%s300 + $0x4] sm:$0xf] %v303
                  %v305 = vld [vmem:[%s299 + $0x10] sm:$0xf]
                  %306 = vst [vmem:[%s300 + $0x8] sm:$0xf] %v305
                  %v307 = vld [vmem:[%s299 + $0x18] sm:$0xf]
                  %308 = vst [vmem:[%s300 + $0xc] sm:$0xf] %v307
                  %v309 = vld [vmem:[%s299 + $0x20] sm:$0xf]
                  %310 = vst [vmem:[%s300 + $0x10] sm:$0xf] %v309
                  %v311 = vld [vmem:[%s299 + $0x28] sm:$0xf]
                  %312 = vst [vmem:[%s300 + $0x14] sm:$0xf] %v311
                  %v313 = vld [vmem:[%s299 + $0x30] sm:$0xf]
                  %314 = vst [vmem:[%s300 + $0x18] sm:$0xf] %v313
                  %v315 = vld [vmem:[%s299 + $0x38] sm:$0xf]
                  %316 = vst [vmem:[%s300 + $0x1c] sm:$0xf] %v315
                  %v317 = vld [vmem:[%s299 + $0x40] sm:$0xf]
                  %318 = vst [vmem:[%s300 + $0x20] sm:$0xf] %v317
                  %v319 = vld [vmem:[%s299 + $0x48] sm:$0xf]
                  %320 = vst [vmem:[%s300 + $0x24] sm:$0xf] %v319
                  %v321 = vld [vmem:[%s299 + $0x50] sm:$0xf]
                  %322 = vst [vmem:[%s300 + $0x28] sm:$0xf] %v321
                  %v323 = vld [vmem:[%s299 + $0x58] sm:$0xf]
                  %324 = vst [vmem:[%s300 + $0x2c] sm:$0xf] %v323
                  %v325 = vld [vmem:[%s299 + $0x60] sm:$0xf]
                  %326 = vst [vmem:[%s300 + $0x30] sm:$0xf] %v325
                  %v327 = vld [vmem:[%s299 + $0x68] sm:$0xf]
                  %328 = vst [vmem:[%s300 + $0x34] sm:$0xf] %v327
                  %v329 = vld [vmem:[%s299 + $0x70] sm:$0xf]
                  %330 = vst [vmem:[%s300 + $0x38] sm:$0xf] %v329
                  %v331 = vld [vmem:[%s299 + $0x78] sm:$0xf]
                  %332 = vst [vmem:[%s300 + $0x3c] sm:$0xf] %v331
                $region63: #{custom_sage_conv.1} parent=50 // loop_footer
                  %s298 = sadd.s32 1, %s294
                $region64: #{custom_sage_conv.1} parent=50 // loop_footer_branch
                  %293 = sbr.rel target = $region60
                $region65: #{custom_sage_conv.1} parent=50 // loop_exit
                  _
              $region51: #{custom_sage_conv.1} parent=35 // pred_fallthru
                _
            $region36: #{custom_sage_conv.1} parent=31 // pred_fallthru
              _
            // Predicated region
            $region37: #{custom_sage_conv.1} parent=31 // pred_check
              _
            $region38: #{custom_sage_conv.1} parent=31 // pred_check_branch
              %240 = sbr.rel (0) target = $region40
            $region39: #{custom_sage_conv.1} parent=31 // pred_region
              loop: start=0, step=1, limit=1
              $region41: #{custom_sage_conv.1} parent=39 // loop_pre_header
                _
              $region42: #{custom_sage_conv.1} parent=39 // loop_header
                %s243 = sphi 0, %s247
                %p244 = scmp.ge.s32.totalorder %s243, 1
                %s248 = sphi %s234, %s234
                %s249 = sphi %s229, %s229
              $region43: #{custom_sage_conv.1} parent=39 // loop_header_branch
                %246 = sbr.rel (%p244) target = $region47
              $region44: #{custom_sage_conv.1} parent=39 // loop_body
                %v250 = vld [vmem:[%s248] sm:$0xf]
                %251 = vst [vmem:[%s249] sm:$0xf] %v250
                %v252 = vld [vmem:[%s248 + $0x8] sm:$0xf]
                %253 = vst [vmem:[%s249 + $0x4] sm:$0xf] %v252
                %v254 = vld [vmem:[%s248 + $0x10] sm:$0xf]
                %255 = vst [vmem:[%s249 + $0x8] sm:$0xf] %v254
                %v256 = vld [vmem:[%s248 + $0x18] sm:$0xf]
                %257 = vst [vmem:[%s249 + $0xc] sm:$0xf] %v256
                %v258 = vld [vmem:[%s248 + $0x20] sm:$0xf]
                %259 = vst [vmem:[%s249 + $0x10] sm:$0xf] %v258
                %v260 = vld [vmem:[%s248 + $0x28] sm:$0xf]
                %261 = vst [vmem:[%s249 + $0x14] sm:$0xf] %v260
                %v262 = vld [vmem:[%s248 + $0x30] sm:$0xf]
                %263 = vst [vmem:[%s249 + $0x18] sm:$0xf] %v262
                %v264 = vld [vmem:[%s248 + $0x38] sm:$0xf]
                %265 = vst [vmem:[%s249 + $0x1c] sm:$0xf] %v264
                %v266 = vld [vmem:[%s248 + $0x40] sm:$0xf]
                %267 = vst [vmem:[%s249 + $0x20] sm:$0xf] %v266
                %v268 = vld [vmem:[%s248 + $0x48] sm:$0xf]
                %269 = vst [vmem:[%s249 + $0x24] sm:$0xf] %v268
                %v270 = vld [vmem:[%s248 + $0x50] sm:$0xf]
                %271 = vst [vmem:[%s249 + $0x28] sm:$0xf] %v270
                %v272 = vld [vmem:[%s248 + $0x58] sm:$0xf]
                %273 = vst [vmem:[%s249 + $0x2c] sm:$0xf] %v272
                %v274 = vld [vmem:[%s248 + $0x60] sm:$0xf]
                %275 = vst [vmem:[%s249 + $0x30] sm:$0xf] %v274
                %v276 = vld [vmem:[%s248 + $0x68] sm:$0xf]
                %277 = vst [vmem:[%s249 + $0x34] sm:$0xf] %v276
                %v278 = vld [vmem:[%s248 + $0x70] sm:$0xf]
                %279 = vst [vmem:[%s249 + $0x38] sm:$0xf] %v278
                %v280 = vld [vmem:[%s248 + $0x78] sm:$0xf]
                %281 = vst [vmem:[%s249 + $0x3c] sm:$0xf] %v280
              $region45: #{custom_sage_conv.1} parent=39 // loop_footer
                %s247 = sadd.s32 1, %s243
              $region46: #{custom_sage_conv.1} parent=39 // loop_footer_branch
                %242 = sbr.rel target = $region42
              $region47: #{custom_sage_conv.1} parent=39 // loop_exit
                _
            $region40: #{custom_sage_conv.1} parent=31 // pred_fallthru
              _
          $region32: #{custom_sage_conv.1} parent=27 // pred_fallthru
            _
          %333 = vnop
        $region28: #{custom_sage_conv.1} parent=23 // pred_fallthru
          _
        // Predicated region
        $region66: #{custom_sage_conv.1} parent=23 // pred_check
          %p334 = pneg %p72
        $region67: #{custom_sage_conv.1} parent=23 // pred_check_branch
          %336 = sbr.rel (%p334) target = $region69
        $region68: #{custom_sage_conv.1} parent=23 // pred_region
          %s337 = smul.u32 16, %s20
          %p338 = scmp.lt.s32.totalorder %s337, 31
          %s339 = scalar_select %p338, %s337, 31
          %s340 = smul.addr %s339, 4
          %s341 = scalar_lea.vmem %s1, %s340
          %s342 = smul.u32 16, %s20
        $region69: #{custom_sage_conv.1} parent=23 // pred_fallthru
          _
        // Predicated region
        $region70: #{custom_sage_conv.1} parent=23 // pred_check
          %p343 = pneg %p98
        $region71: #{custom_sage_conv.1} parent=23 // pred_check_branch
          %345 = sbr.rel (%p343) target = $region73
        $region72: #{custom_sage_conv.1} parent=23 // pred_region
          %s346 = smul.u32 16, %s19
          %p347 = scmp.lt.s32.totalorder %s346, 31
          %s348 = scalar_select %p347, %s346, 31
          %s349 = smul.addr %s348, 4
          %s350 = scalar_lea.vmem %s2, %s349
          %s351 = smul.u32 16, %s19
        $region73: #{custom_sage_conv.1} parent=23 // pred_fallthru
          _
        // Predicated region
        $region74: #{custom_sage_conv.1} parent=23 // pred_check
          %p352 = pneg %p124
        $region75: #{custom_sage_conv.1} parent=23 // pred_check_branch
          %354 = sbr.rel (%p352) target = $region77
        $region76: #{custom_sage_conv.1} parent=23 // pred_region
          %s355 = smul.u32 16, %s19
          %p356 = scmp.lt.s32.totalorder %s355, 31
          %s357 = scalar_select %p356, %s355, 31
          %s358 = smul.addr %s357, 8
          %s359 = scalar_lea.vmem %s3, %s358
          %s360 = smul.u32 16, %s19
        $region77: #{custom_sage_conv.1} parent=23 // pred_fallthru
          _
      $region24: #{custom_sage_conv.1} parent=5 // pred_fallthru
        _
      %p361 = scmp.le.s32.totalorder 1, %s12
      %p362 = scmp.lt.s32.totalorder %s12, 5
      %p363 = pnand %p361, %p362
      %p364 = pneg %p363
      // Predicated region
      $region78: #{custom_sage_conv.1} parent=5 // pred_check
        _
      $region79: #{custom_sage_conv.1} parent=5 // pred_check_branch
        %366 = sbr.rel (%p363) target = $region81
      $region80: #{custom_sage_conv.1} parent=5 // pred_region
        %s367 = ssub.s32 %s12, 1
        %s368 = sand.u32 %s39, 1
        %s369 = sand.u32 %s39, 1
        %s370 = smul.addr %s369, 64
        %s371 = scalar_lea.vmem [#allocation3], %s370
        // Predicated region
        $region82: #{custom_sage_conv.1} parent=80 // pred_check
          %p372 = pneg %p52
        $region83: #{custom_sage_conv.1} parent=80 // pred_check_branch
          %374 = sbr.rel (%p372) target = $region85
        $region84: #{custom_sage_conv.1} parent=80 // pred_region
          _
        $region85: #{custom_sage_conv.1} parent=80 // pred_fallthru
          _
        %s375 = sand.u32 %s39, 1
        %s376 = sand.u32 %s39, 1
        %s377 = smul.addr %s376, 64
        %s378 = scalar_lea.vmem [#allocation3], %s377
        %p379 = pneg %p52
        %p380 = pneg %p49
        %s381 = smul.u32 16, %s22
        %p382 = scmp.lt.s32.totalorder %s381, 31
        %s383 = scalar_select %p382, %s381, 31
        %s384 = smul.addr %s383, 4
        %s385 = scalar_lea.vmem %s1, %s384
        %p386 = pneg %p78
        %p387 = pneg %p75
        %s388 = smul.u32 16, %s21
        %p389 = scmp.lt.s32.totalorder %s388, 31
        %s390 = scalar_select %p389, %s388, 31
        %s391 = smul.addr %s390, 4
        %s392 = scalar_lea.vmem %s2, %s391
        %p393 = pneg %p104
        %p394 = pneg %p101
        %s395 = smul.u32 16, %s21
        %p396 = scmp.lt.s32.totalorder %s395, 31
        %s397 = scalar_select %p396, %s395, 31
        %s398 = smul.addr %s397, 8
        %s399 = scalar_lea.vmem %s3, %s398
        %p400 = pneg %p130
        %p401 = pneg %p127
        %p402 = pneg %p151
        %p403 = pneg %p148
        %p404 = pneg %p172
        %p405 = pneg %p169
        %p406 = pneg %p198
        %p407 = pneg %p195
        %s408 = smul.u32 16, %s21
        %p409 = scmp.lt.s32.totalorder %s408, 31
        %s410 = scalar_select %p409, %s408, 31
        %s411 = smul.addr %s410, 8
        %s412 = scalar_lea.vmem %s6, %s411
        %s413 = smul.u32 16, %s21
        %s414 = smul.u32 16, %s22
        %p415 = scmp.lt.s32.totalorder %s414, 31
        %s416 = scalar_select %p415, %s414, 31
        %s417 = smul.addr %s416, 4
        %s418 = scalar_lea.vmem %s1, %s417
        %s419 = smul.u32 16, %s22
        %s420 = smul.u32 16, %s21
        %p421 = scmp.lt.s32.totalorder %s420, 31
        %s422 = scalar_select %p421, %s420, 31
        %s423 = smul.addr %s422, 4
        %s424 = scalar_lea.vmem %s2, %s423
        %s425 = smul.u32 16, %s21
        %s426 = smul.u32 16, %s21
        %p427 = scmp.lt.s32.totalorder %s426, 31
        %s428 = scalar_select %p427, %s426, 31
        %s429 = smul.addr %s428, 8
        %s430 = scalar_lea.vmem %s3, %s429
        %s431 = smul.u32 16, %s21
        %s432 = smul.u32 16, %s21
        %p433 = scmp.lt.s32.totalorder %s432, 31
        %s434 = scalar_select %p433, %s432, 31
        %s435 = smul.addr %s434, 8
        %s436 = scalar_lea.vmem %s6, %s435
        %s437 = smul.u32 16, %s21
        %p439 = scmp.eq.s32.totalorder %s22, 0
        // Predicated region
        $region86: #{custom_sage_conv.1} parent=80 // pred_check
          %p440 = pneg %p439
        $region87: #{custom_sage_conv.1} parent=80 // pred_check_branch
          %442 = sbr.rel (%p440) target = $region89
        $region88: #{custom_sage_conv.1} parent=80 // pred_region
          %443 = vst [vmem:[#allocation2] sm:$0xff] 0.0
          %444 = vst [vmem:[#allocation2 + $0x8] sm:$0xff] 0.0
          %445 = vst [vmem:[#allocation2 + $0x10] sm:$0xff] 0.0
          %446 = vst [vmem:[#allocation2 + $0x18] sm:$0xff] 0.0
          %447 = vst [vmem:[#allocation2 + $0x20] sm:$0xff] 0.0
          %448 = vst [vmem:[#allocation2 + $0x28] sm:$0xff] 0.0
          %449 = vst [vmem:[#allocation2 + $0x30] sm:$0xff] 0.0
          %450 = vst [vmem:[#allocation2 + $0x38] sm:$0xff] 0.0
          %451 = vst [vmem:[#allocation2 + $0x40] sm:$0xff] 0.0
          %452 = vst [vmem:[#allocation2 + $0x48] sm:$0xff] 0.0
          %453 = vst [vmem:[#allocation2 + $0x50] sm:$0xff] 0.0
          %454 = vst [vmem:[#allocation2 + $0x58] sm:$0xff] 0.0
          %455 = vst [vmem:[#allocation2 + $0x60] sm:$0xff] 0.0
          %456 = vst [vmem:[#allocation2 + $0x68] sm:$0xff] 0.0
          %457 = vst [vmem:[#allocation2 + $0x70] sm:$0xff] 0.0
          %458 = vst [vmem:[#allocation2 + $0x78] sm:$0xff] 0.0
        $region89: #{custom_sage_conv.1} parent=80 // pred_fallthru
          _
        %v459 = vld [vmem:[#allocation2] sm:$0xff]
        %v460 = vld [vmem:[#allocation2 + $0x8] sm:$0xff]
        %v461 = vld [vmem:[#allocation2 + $0x10] sm:$0xff]
        %v462 = vld [vmem:[#allocation2 + $0x18] sm:$0xff]
        %v463 = vld [vmem:[#allocation2 + $0x20] sm:$0xff]
        %v464 = vld [vmem:[#allocation2 + $0x28] sm:$0xff]
        %v465 = vld [vmem:[#allocation2 + $0x30] sm:$0xff]
        %v466 = vld [vmem:[#allocation2 + $0x38] sm:$0xff]
        %v467 = vld [vmem:[#allocation2 + $0x40] sm:$0xff]
        %v468 = vld [vmem:[#allocation2 + $0x48] sm:$0xff]
        %v469 = vld [vmem:[#allocation2 + $0x50] sm:$0xff]
        %v470 = vld [vmem:[#allocation2 + $0x58] sm:$0xff]
        %v471 = vld [vmem:[#allocation2 + $0x60] sm:$0xff]
        %v472 = vld [vmem:[#allocation2 + $0x68] sm:$0xff]
        %v473 = vld [vmem:[#allocation2 + $0x70] sm:$0xff]
        %v474 = vld [vmem:[#allocation2 + $0x78] sm:$0xff]
        %v475 = vld [vmem:[%s371] sm:$0xf]
        %v476 = vld [vmem:[%s371 + $0x4] sm:$0xf]
        %v477 = vld [vmem:[%s371 + $0x8] sm:$0xf]
        %v478 = vld [vmem:[%s371 + $0xc] sm:$0xf]
        %v479 = vld [vmem:[%s371 + $0x10] sm:$0xf]
        %v480 = vld [vmem:[%s371 + $0x14] sm:$0xf]
        %v481 = vld [vmem:[%s371 + $0x18] sm:$0xf]
        %v482 = vld [vmem:[%s371 + $0x1c] sm:$0xf]
        %v483 = vld [vmem:[%s371 + $0x20] sm:$0xf]
        %v484 = vld [vmem:[%s371 + $0x24] sm:$0xf]
        %v485 = vld [vmem:[%s371 + $0x28] sm:$0xf]
        %v486 = vld [vmem:[%s371 + $0x2c] sm:$0xf]
        %v487 = vld [vmem:[%s371 + $0x30] sm:$0xf]
        %v488 = vld [vmem:[%s371 + $0x34] sm:$0xf]
        %v489 = vld [vmem:[%s371 + $0x38] sm:$0xf]
        %v490 = vld [vmem:[%s371 + $0x3c] sm:$0xf]
        %v491 = vld [vmem:[%s418] sm:$0xf]
        %v492 = vld [vmem:[%s418 + $0x4] sm:$0xf]
        %v493 = vld [vmem:[%s418 + $0x8] sm:$0xf]
        %v494 = vld [vmem:[%s418 + $0xc] sm:$0xf]
        %v495 = vld [vmem:[%s418 + $0x10] sm:$0xf]
        %v496 = vld [vmem:[%s418 + $0x14] sm:$0xf]
        %v497 = vld [vmem:[%s418 + $0x18] sm:$0xf]
        %v498 = vld [vmem:[%s418 + $0x1c] sm:$0xf]
        %v499 = vld [vmem:[%s418 + $0x20] sm:$0xf]
        %v500 = vld [vmem:[%s418 + $0x24] sm:$0xf]
        %v501 = vld [vmem:[%s418 + $0x28] sm:$0xf]
        %v502 = vld [vmem:[%s418 + $0x2c] sm:$0xf]
        %v503 = vld [vmem:[%s418 + $0x30] sm:$0xf]
        %v504 = vld [vmem:[%s418 + $0x34] sm:$0xf]
        %v505 = vld [vmem:[%s418 + $0x38] sm:$0xf]
        %v506 = vld [vmem:[%s418 + $0x3c] sm:$0xf]
        %v523 = vunpack.c.l.b16 %v475
        %v524 = vunpack.c.l.b16 %v476
        %v525 = vunpack.c.l.b16 %v477
        %v526 = vunpack.c.l.b16 %v478
        %v527 = vunpack.c.l.b16 %v479
        %v528 = vunpack.c.l.b16 %v480
        %v529 = vunpack.c.l.b16 %v481
        %v530 = vunpack.c.l.b16 %v482
        %v531 = vunpack.c.l.b16 %v483
        %v532 = vunpack.c.l.b16 %v484
        %v533 = vunpack.c.l.b16 %v485
        %v534 = vunpack.c.l.b16 %v486
        %v535 = vunpack.c.l.b16 %v487
        %v536 = vunpack.c.l.b16 %v488
        %v537 = vunpack.c.l.b16 %v489
        %v538 = vunpack.c.l.b16 %v490
        %v539 = vpack.c.b16 %v524, %v523
        %v540 = vpack.c.b16 %v526, %v525
        %v541 = vpack.c.b16 %v528, %v527
        %v542 = vpack.c.b16 %v530, %v529
        %v543 = vpack.c.b16 %v532, %v531
        %v544 = vpack.c.b16 %v534, %v533
        %v545 = vpack.c.b16 %v536, %v535
        %v546 = vpack.c.b16 %v538, %v537
        %v571 = vunpack.c.l.b16 %v491
        %v572 = vunpack.c.l.b16 %v492
        %v573 = vunpack.c.l.b16 %v493
        %v574 = vunpack.c.l.b16 %v494
        %v575 = vunpack.c.l.b16 %v495
        %v576 = vunpack.c.l.b16 %v496
        %v577 = vunpack.c.l.b16 %v497
        %v578 = vunpack.c.l.b16 %v498
        %v579 = vunpack.c.l.b16 %v499
        %v580 = vunpack.c.l.b16 %v500
        %v581 = vunpack.c.l.b16 %v501
        %v582 = vunpack.c.l.b16 %v502
        %v583 = vunpack.c.l.b16 %v503
        %v584 = vunpack.c.l.b16 %v504
        %v585 = vunpack.c.l.b16 %v505
        %v586 = vunpack.c.l.b16 %v506
        %v587 = vpack.c.b16 %v572, %v571
        %v588 = vpack.c.b16 %v574, %v573
        %v589 = vpack.c.b16 %v576, %v575
        %v590 = vpack.c.b16 %v578, %v577
        %v591 = vpack.c.b16 %v580, %v579
        %v592 = vpack.c.b16 %v582, %v581
        %v593 = vpack.c.b16 %v584, %v583
        %v594 = vpack.c.b16 %v586, %v585
        %603 = vmatprep.subr.bf16.mxu0 0
        %604 = vmatpush1.bf16.msra.mxu0 %v587
        %605 = vmatprep.subr.bf16.mxu0 0
        %606 = vmatpush1.bf16.msra.mxu0 %v588
        %607 = vmatprep.subr.bf16.mxu0 0
        %608 = vmatpush1.bf16.msra.mxu0 %v589
        %609 = vmatprep.subr.bf16.mxu0 0
        %610 = vmatpush1.bf16.msra.mxu0 %v590
        %611 = vmatprep.subr.bf16.mxu0 0
        %612 = vmatpush1.bf16.msra.mxu0 %v591
        %613 = vmatprep.subr.bf16.mxu0 0
        %614 = vmatpush1.bf16.msra.mxu0 %v592
        %615 = vmatprep.subr.bf16.mxu0 0
        %616 = vmatpush1.bf16.msra.mxu0 %v593
        %617 = vmatprep.subr.bf16.mxu0 0
        %618 = vmatpush1.bf16.msra.mxu0 %v594
        %619 = vmatprep.subr.bf16.mxu0 0
        %620 = vmatpush1.bf16.msra.mxu0 0
        %621 = vmatprep.subr.bf16.mxu0 0
        %622 = vmatpush1.bf16.msra.mxu0 0
        %623 = vmatprep.subr.bf16.mxu0 0
        %624 = vmatpush1.bf16.msra.mxu0 0
        %625 = vmatprep.subr.bf16.mxu0 0
        %626 = vmatpush1.bf16.msra.mxu0 0
        %627 = vmatprep.subr.bf16.mxu0 0
        %628 = vmatpush1.bf16.msra.mxu0 0
        %629 = vmatprep.subr.bf16.mxu0 0
        %630 = vmatpush1.bf16.msra.mxu0 0
        %631 = vmatprep.subr.bf16.mxu0 0
        %632 = vmatpush1.bf16.msra.mxu0 0
        %633 = vmatprep.subr.bf16.mxu0 0
        %634 = vmatpush1.bf16.msra.mxu0 0
        %635 = vmatprep.mubr.bf16.mxu0 0
        %636 = vmatmul.mubr.bf16.gmra.mrb[0].mxu0 %v539
        %v637 = vpop.f32.mrb[0].mxu0
        %v638 = vadd.f32 0.0, %v637
        %v639 = vpop.f32.mrb[0].mxu0
        %v640 = vpop.f32.mrb[0].mxu0
        %v641 = vadd.f32 0.0, %v640
        %v642 = vpop.f32.mrb[0].mxu0
        %643 = vmatprep.mubr.bf16.mxu0 0
        %644 = vmatmul.mubr.bf16.gmra.mrb[0].mxu0 %v540
        %v645 = vpop.f32.mrb[0].mxu0
        %v646 = vadd.f32 0.0, %v645
        %v647 = vpop.f32.mrb[0].mxu0
        %v648 = vpop.f32.mrb[0].mxu0
        %v649 = vadd.f32 0.0, %v648
        %v650 = vpop.f32.mrb[0].mxu0
        %651 = vmatprep.mubr.bf16.mxu0 0
        %652 = vmatmul.mubr.bf16.gmra.mrb[0].mxu0 %v541
        %v653 = vpop.f32.mrb[0].mxu0
        %v654 = vadd.f32 0.0, %v653
        %v655 = vpop.f32.mrb[0].mxu0
        %v656 = vpop.f32.mrb[0].mxu0
        %v657 = vadd.f32 0.0, %v656
        %v658 = vpop.f32.mrb[0].mxu0
        %659 = vmatprep.mubr.bf16.mxu0 0
        %660 = vmatmul.mubr.bf16.gmra.mrb[0].mxu0 %v542
        %v661 = vpop.f32.mrb[0].mxu0
        %v662 = vadd.f32 0.0, %v661
        %v663 = vpop.f32.mrb[0].mxu0
        %v664 = vpop.f32.mrb[0].mxu0
        %v665 = vadd.f32 0.0, %v664
        %v666 = vpop.f32.mrb[0].mxu0
        %667 = vmatprep.mubr.bf16.mxu0 0
        %668 = vmatmul.mubr.bf16.gmra.mrb[0].mxu0 %v543
        %v669 = vpop.f32.mrb[0].mxu0
        %v670 = vadd.f32 0.0, %v669
        %v671 = vpop.f32.mrb[0].mxu0
        %v672 = vpop.f32.mrb[0].mxu0
        %v673 = vadd.f32 0.0, %v672
        %v674 = vpop.f32.mrb[0].mxu0
        %675 = vmatprep.mubr.bf16.mxu0 0
        %676 = vmatmul.mubr.bf16.gmra.mrb[0].mxu0 %v544
        %v677 = vpop.f32.mrb[0].mxu0
        %v678 = vadd.f32 0.0, %v677
        %v679 = vpop.f32.mrb[0].mxu0
        %v680 = vpop.f32.mrb[0].mxu0
        %v681 = vadd.f32 0.0, %v680
        %v682 = vpop.f32.mrb[0].mxu0
        %683 = vmatprep.mubr.bf16.mxu0 0
        %684 = vmatmul.mubr.bf16.gmra.mrb[0].mxu0 %v545
        %v685 = vpop.f32.mrb[0].mxu0
        %v686 = vadd.f32 0.0, %v685
        %v687 = vpop.f32.mrb[0].mxu0
        %v688 = vpop.f32.mrb[0].mxu0
        %v689 = vadd.f32 0.0, %v688
        %v690 = vpop.f32.mrb[0].mxu0
        %691 = vmatprep.mubr.bf16.mxu0 0
        %692 = vmatmul.mubr.bf16.gmra.mrb[0].mxu0 %v546
        %v693 = vpop.f32.mrb[0].mxu0
        %v694 = vadd.f32 0.0, %v693
        %v695 = vpop.f32.mrb[0].mxu0
        %v696 = vpop.f32.mrb[0].mxu0
        %v697 = vadd.f32 0.0, %v696
        %v698 = vpop.f32.mrb[0].mxu0
        %699 = vdwg.mxu0
        %v700 = vadd.f32 %v459, %v638
        %v701 = vadd.f32 %v460, %v641
        %v702 = vadd.f32 %v461, %v646
        %v703 = vadd.f32 %v462, %v649
        %v704 = vadd.f32 %v463, %v654
        %v705 = vadd.f32 %v464, %v657
        %v706 = vadd.f32 %v465, %v662
        %v707 = vadd.f32 %v466, %v665
        %v708 = vadd.f32 %v467, %v670
        %v709 = vadd.f32 %v468, %v673
        %v710 = vadd.f32 %v469, %v678
        %v711 = vadd.f32 %v470, %v681
        %v712 = vadd.f32 %v471, %v686
        %v713 = vadd.f32 %v472, %v689
        %v714 = vadd.f32 %v473, %v694
        %v715 = vadd.f32 %v474, %v697
        %716 = vst [vmem:[#allocation2] sm:$0xff] %v700
        %717 = vst [vmem:[#allocation2 + $0x8] sm:$0xff] %v701
        %718 = vst [vmem:[#allocation2 + $0x10] sm:$0xff] %v702
        %719 = vst [vmem:[#allocation2 + $0x18] sm:$0xff] %v703
        %720 = vst [vmem:[#allocation2 + $0x20] sm:$0xff] %v704
        %721 = vst [vmem:[#allocation2 + $0x28] sm:$0xff] %v705
        %722 = vst [vmem:[#allocation2 + $0x30] sm:$0xff] %v706
        %723 = vst [vmem:[#allocation2 + $0x38] sm:$0xff] %v707
        %724 = vst [vmem:[#allocation2 + $0x40] sm:$0xff] %v708
        %725 = vst [vmem:[#allocation2 + $0x48] sm:$0xff] %v709
        %726 = vst [vmem:[#allocation2 + $0x50] sm:$0xff] %v710
        %727 = vst [vmem:[#allocation2 + $0x58] sm:$0xff] %v711
        %728 = vst [vmem:[#allocation2 + $0x60] sm:$0xff] %v712
        %729 = vst [vmem:[#allocation2 + $0x68] sm:$0xff] %v713
        %730 = vst [vmem:[#allocation2 + $0x70] sm:$0xff] %v714
        %731 = vst [vmem:[#allocation2 + $0x78] sm:$0xff] %v715
        %p732 = scmp.eq.s32.totalorder %s22, 1
        // Predicated region
        $region90: #{custom_sage_conv.1} parent=80 // pred_check
          %p733 = pneg %p732
        $region91: #{custom_sage_conv.1} parent=80 // pred_check_branch
          %735 = sbr.rel (%p733) target = $region93
        $region92: #{custom_sage_conv.1} parent=80 // pred_region
          %v736 = vld [vmem:[#allocation2] sm:$0xff]
          %v737 = vld [vmem:[#allocation2 + $0x8] sm:$0xff]
          %v738 = vld [vmem:[#allocation2 + $0x10] sm:$0xff]
          %v739 = vld [vmem:[#allocation2 + $0x18] sm:$0xff]
          %v740 = vld [vmem:[#allocation2 + $0x20] sm:$0xff]
          %v741 = vld [vmem:[#allocation2 + $0x28] sm:$0xff]
          %v742 = vld [vmem:[#allocation2 + $0x30] sm:$0xff]
          %v743 = vld [vmem:[#allocation2 + $0x38] sm:$0xff]
          %v744 = vld [vmem:[#allocation2 + $0x40] sm:$0xff]
          %v745 = vld [vmem:[#allocation2 + $0x48] sm:$0xff]
          %v746 = vld [vmem:[#allocation2 + $0x50] sm:$0xff]
          %v747 = vld [vmem:[#allocation2 + $0x58] sm:$0xff]
          %v748 = vld [vmem:[#allocation2 + $0x60] sm:$0xff]
          %v749 = vld [vmem:[#allocation2 + $0x68] sm:$0xff]
          %v750 = vld [vmem:[#allocation2 + $0x70] sm:$0xff]
          %v751 = vld [vmem:[#allocation2 + $0x78] sm:$0xff]
          %v752 = vld [vmem:[%s430] sm:$0xff]
          %v753 = vld [vmem:[%s430 + $0x8] sm:$0xff]
          %v754 = vld [vmem:[%s430 + $0x10] sm:$0xff]
          %v755 = vld [vmem:[%s430 + $0x18] sm:$0xff]
          %v756 = vld [vmem:[%s430 + $0x20] sm:$0xff]
          %v757 = vld [vmem:[%s430 + $0x28] sm:$0xff]
          %v758 = vld [vmem:[%s430 + $0x30] sm:$0xff]
          %v759 = vld [vmem:[%s430 + $0x38] sm:$0xff]
          %v760 = vld [vmem:[%s430 + $0x40] sm:$0xff]
          %v761 = vld [vmem:[%s430 + $0x48] sm:$0xff]
          %v762 = vld [vmem:[%s430 + $0x50] sm:$0xff]
          %v763 = vld [vmem:[%s430 + $0x58] sm:$0xff]
          %v764 = vld [vmem:[%s430 + $0x60] sm:$0xff]
          %v765 = vld [vmem:[%s430 + $0x68] sm:$0xff]
          %v766 = vld [vmem:[%s430 + $0x70] sm:$0xff]
          %v767 = vld [vmem:[%s430 + $0x78] sm:$0xff]
          %769 = vset.pattern.permute.xlu0 0
          %770 = vperm.xlu0 %769, %v752
          %v771 = vpop.permute.xlu0 %770
          %774 = vset.pattern.permute.xlu0 0
          %775 = vperm.xlu0 %774, %v753
          %v776 = vpop.permute.xlu0 %775
          %779 = vset.pattern.permute.xlu0 0
          %780 = vperm.xlu0 %779, %v754
          %v781 = vpop.permute.xlu0 %780
          %784 = vset.pattern.permute.xlu0 0
          %785 = vperm.xlu0 %784, %v755
          %v786 = vpop.permute.xlu0 %785
          %789 = vset.pattern.permute.xlu0 0
          %790 = vperm.xlu0 %789, %v756
          %v791 = vpop.permute.xlu0 %790
          %794 = vset.pattern.permute.xlu0 0
          %795 = vperm.xlu0 %794, %v757
          %v796 = vpop.permute.xlu0 %795
          %799 = vset.pattern.permute.xlu0 0
          %800 = vperm.xlu0 %799, %v758
          %v801 = vpop.permute.xlu0 %800
          %804 = vset.pattern.permute.xlu0 0
          %805 = vperm.xlu0 %804, %v759
          %v806 = vpop.permute.xlu0 %805
          %809 = vset.pattern.permute.xlu0 0
          %810 = vperm.xlu0 %809, %v760
          %v811 = vpop.permute.xlu0 %810
          %814 = vset.pattern.permute.xlu0 0
          %815 = vperm.xlu0 %814, %v761
          %v816 = vpop.permute.xlu0 %815
          %819 = vset.pattern.permute.xlu0 0
          %820 = vperm.xlu0 %819, %v762
          %v821 = vpop.permute.xlu0 %820
          %824 = vset.pattern.permute.xlu0 0
          %825 = vperm.xlu0 %824, %v763
          %v826 = vpop.permute.xlu0 %825
          %829 = vset.pattern.permute.xlu0 0
          %830 = vperm.xlu0 %829, %v764
          %v831 = vpop.permute.xlu0 %830
          %834 = vset.pattern.permute.xlu0 0
          %835 = vperm.xlu0 %834, %v765
          %v836 = vpop.permute.xlu0 %835
          %839 = vset.pattern.permute.xlu0 0
          %840 = vperm.xlu0 %839, %v766
          %v841 = vpop.permute.xlu0 %840
          %844 = vset.pattern.permute.xlu0 0
          %845 = vperm.xlu0 %844, %v767
          %v846 = vpop.permute.xlu0 %845
          %v848 = vmul.f32 %v736, %v771
          %v849 = vmul.f32 %v737, %v776
          %v850 = vmul.f32 %v738, %v781
          %v851 = vmul.f32 %v739, %v786
          %v852 = vmul.f32 %v740, %v791
          %v853 = vmul.f32 %v741, %v796
          %v854 = vmul.f32 %v742, %v801
          %v855 = vmul.f32 %v743, %v806
          %v856 = vmul.f32 %v744, %v811
          %v857 = vmul.f32 %v745, %v816
          %v858 = vmul.f32 %v746, %v821
          %v859 = vmul.f32 %v747, %v826
          %v860 = vmul.f32 %v748, %v831
          %v861 = vmul.f32 %v749, %v836
          %v862 = vmul.f32 %v750, %v841
          %v863 = vmul.f32 %v751, %v846
          %v864 = vpack.c.bf16 %v849, %v848
          %v865 = vpack.c.bf16 %v851, %v850
          %v866 = vpack.c.bf16 %v853, %v852
          %v867 = vpack.c.bf16 %v855, %v854
          %v868 = vpack.c.bf16 %v857, %v856
          %v869 = vpack.c.bf16 %v859, %v858
          %v870 = vpack.c.bf16 %v861, %v860
          %v871 = vpack.c.bf16 %v863, %v862
          %v872 = vld [vmem:[%s4] sm:$0xf]
          %v873 = vld [vmem:[%s4 + $0x4] sm:$0xf]
          %v874 = vld [vmem:[%s4 + $0x8] sm:$0xf]
          %v875 = vld [vmem:[%s4 + $0xc] sm:$0xf]
          %v876 = vld [vmem:[%s4 + $0x10] sm:$0xf]
          %v877 = vld [vmem:[%s4 + $0x14] sm:$0xf]
          %v878 = vld [vmem:[%s4 + $0x18] sm:$0xf]
          %v879 = vld [vmem:[%s4 + $0x1c] sm:$0xf]
          %v880 = vld [vmem:[%s4 + $0x20] sm:$0xf]
          %v881 = vld [vmem:[%s4 + $0x24] sm:$0xf]
          %v882 = vld [vmem:[%s4 + $0x28] sm:$0xf]
          %v883 = vld [vmem:[%s4 + $0x2c] sm:$0xf]
          %v884 = vld [vmem:[%s4 + $0x30] sm:$0xf]
          %v885 = vld [vmem:[%s4 + $0x34] sm:$0xf]
          %v886 = vld [vmem:[%s4 + $0x38] sm:$0xf]
          %v887 = vld [vmem:[%s4 + $0x3c] sm:$0xf]
          %v888 = vld [vmem:[%s424] sm:$0xf]
          %v889 = vld [vmem:[%s424 + $0x4] sm:$0xf]
          %v890 = vld [vmem:[%s424 + $0x8] sm:$0xf]
          %v891 = vld [vmem:[%s424 + $0xc] sm:$0xf]
          %v892 = vld [vmem:[%s424 + $0x10] sm:$0xf]
          %v893 = vld [vmem:[%s424 + $0x14] sm:$0xf]
          %v894 = vld [vmem:[%s424 + $0x18] sm:$0xf]
          %v895 = vld [vmem:[%s424 + $0x1c] sm:$0xf]
          %v896 = vld [vmem:[%s424 + $0x20] sm:$0xf]
          %v897 = vld [vmem:[%s424 + $0x24] sm:$0xf]
          %v898 = vld [vmem:[%s424 + $0x28] sm:$0xf]
          %v899 = vld [vmem:[%s424 + $0x2c] sm:$0xf]
          %v900 = vld [vmem:[%s424 + $0x30] sm:$0xf]
          %v901 = vld [vmem:[%s424 + $0x34] sm:$0xf]
          %v902 = vld [vmem:[%s424 + $0x38] sm:$0xf]
          %v903 = vld [vmem:[%s424 + $0x3c] sm:$0xf]
          %v904 = vld [vmem:[%s5] sm:$0xf]
          %v905 = vld [vmem:[%s5 + $0x4] sm:$0xf]
          %v906 = vld [vmem:[%s5 + $0x8] sm:$0xf]
          %v907 = vld [vmem:[%s5 + $0xc] sm:$0xf]
          %v908 = vld [vmem:[%s5 + $0x10] sm:$0xf]
          %v909 = vld [vmem:[%s5 + $0x14] sm:$0xf]
          %v910 = vld [vmem:[%s5 + $0x18] sm:$0xf]
          %v911 = vld [vmem:[%s5 + $0x1c] sm:$0xf]
          %v912 = vld [vmem:[%s5 + $0x20] sm:$0xf]
          %v913 = vld [vmem:[%s5 + $0x24] sm:$0xf]
          %v914 = vld [vmem:[%s5 + $0x28] sm:$0xf]
          %v915 = vld [vmem:[%s5 + $0x2c] sm:$0xf]
          %v916 = vld [vmem:[%s5 + $0x30] sm:$0xf]
          %v917 = vld [vmem:[%s5 + $0x34] sm:$0xf]
          %v918 = vld [vmem:[%s5 + $0x38] sm:$0xf]
          %v919 = vld [vmem:[%s5 + $0x3c] sm:$0xf]
          %v936 = vunpack.c.l.b16 %v888
          %v937 = vunpack.c.l.b16 %v889
          %v938 = vunpack.c.l.b16 %v890
          %v939 = vunpack.c.l.b16 %v891
          %v940 = vunpack.c.l.b16 %v892
          %v941 = vunpack.c.l.b16 %v893
          %v942 = vunpack.c.l.b16 %v894
          %v943 = vunpack.c.l.b16 %v895
          %v944 = vunpack.c.l.b16 %v896
          %v945 = vunpack.c.l.b16 %v897
          %v946 = vunpack.c.l.b16 %v898
          %v947 = vunpack.c.l.b16 %v899
          %v948 = vunpack.c.l.b16 %v900
          %v949 = vunpack.c.l.b16 %v901
          %v950 = vunpack.c.l.b16 %v902
          %v951 = vunpack.c.l.b16 %v903
          %v952 = vpack.c.b16 %v937, %v936
          %v953 = vpack.c.b16 %v939, %v938
          %v954 = vpack.c.b16 %v941, %v940
          %v955 = vpack.c.b16 %v943, %v942
          %v956 = vpack.c.b16 %v945, %v944
          %v957 = vpack.c.b16 %v947, %v946
          %v958 = vpack.c.b16 %v949, %v948
          %v959 = vpack.c.b16 %v951, %v950
          %v984 = vunpack.c.l.b16 %v904
          %v985 = vunpack.c.l.b16 %v905
          %v986 = vunpack.c.l.b16 %v906
          %v987 = vunpack.c.l.b16 %v907
          %v988 = vunpack.c.l.b16 %v908
          %v989 = vunpack.c.l.b16 %v909
          %v990 = vunpack.c.l.b16 %v910
          %v991 = vunpack.c.l.b16 %v911
          %v992 = vunpack.c.l.b16 %v912
          %v993 = vunpack.c.l.b16 %v913
          %v994 = vunpack.c.l.b16 %v914
          %v995 = vunpack.c.l.b16 %v915
          %v996 = vunpack.c.l.b16 %v916
          %v997 = vunpack.c.l.b16 %v917
          %v998 = vunpack.c.l.b16 %v918
          %v999 = vunpack.c.l.b16 %v919
          %v1000 = vpack.c.b16 %v985, %v984
          %v1001 = vpack.c.b16 %v987, %v986
          %v1002 = vpack.c.b16 %v989, %v988
          %v1003 = vpack.c.b16 %v991, %v990
          %v1004 = vpack.c.b16 %v993, %v992
          %v1005 = vpack.c.b16 %v995, %v994
          %v1006 = vpack.c.b16 %v997, %v996
          %v1007 = vpack.c.b16 %v999, %v998
          %1016 = vmatprep.subr.bf16.mxu0 0
          %1017 = vmatpush1.bf16.msra.mxu0 %v1000
          %1018 = vmatprep.subr.bf16.mxu0 0
          %1019 = vmatpush1.bf16.msra.mxu0 %v1001
          %1020 = vmatprep.subr.bf16.mxu0 0
          %1021 = vmatpush1.bf16.msra.mxu0 %v1002
          %1022 = vmatprep.subr.bf16.mxu0 0
          %1023 = vmatpush1.bf16.msra.mxu0 %v1003
          %1024 = vmatprep.subr.bf16.mxu0 0
          %1025 = vmatpush1.bf16.msra.mxu0 %v1004
          %1026 = vmatprep.subr.bf16.mxu0 0
          %1027 = vmatpush1.bf16.msra.mxu0 %v1005
          %1028 = vmatprep.subr.bf16.mxu0 0
          %1029 = vmatpush1.bf16.msra.mxu0 %v1006
          %1030 = vmatprep.subr.bf16.mxu0 0
          %1031 = vmatpush1.bf16.msra.mxu0 %v1007
          %1032 = vmatprep.subr.bf16.mxu0 0
          %1033 = vmatpush1.bf16.msra.mxu0 0
          %1034 = vmatprep.subr.bf16.mxu0 0
          %1035 = vmatpush1.bf16.msra.mxu0 0
          %1036 = vmatprep.subr.bf16.mxu0 0
          %1037 = vmatpush1.bf16.msra.mxu0 0
          %1038 = vmatprep.subr.bf16.mxu0 0
          %1039 = vmatpush1.bf16.msra.mxu0 0
          %1040 = vmatprep.subr.bf16.mxu0 0
          %1041 = vmatpush1.bf16.msra.mxu0 0
          %1042 = vmatprep.subr.bf16.mxu0 0
          %1043 = vmatpush1.bf16.msra.mxu0 0
          %1044 = vmatprep.subr.bf16.mxu0 0
          %1045 = vmatpush1.bf16.msra.mxu0 0
          %1046 = vmatprep.subr.bf16.mxu0 0
          %1047 = vmatpush1.bf16.msra.mxu0 0
          %1048 = vmatprep.mubr.bf16.mxu0 0
          %1049 = vmatmul.mubr.bf16.gmra.mrb[0].mxu0 %v952
          %v1050 = vpop.f32.mrb[0].mxu0
          %v1051 = vadd.f32 0.0, %v1050
          %v1052 = vpop.f32.mrb[0].mxu0
          %v1053 = vpop.f32.mrb[0].mxu0
          %v1054 = vadd.f32 0.0, %v1053
          %v1055 = vpop.f32.mrb[0].mxu0
          %1056 = vmatprep.mubr.bf16.mxu0 0
          %1057 = vmatmul.mubr.bf16.gmra.mrb[0].mxu0 %v953
          %v1058 = vpop.f32.mrb[0].mxu0
          %v1059 = vadd.f32 0.0, %v1058
          %v1060 = vpop.f32.mrb[0].mxu0
          %v1061 = vpop.f32.mrb[0].mxu0
          %v1062 = vadd.f32 0.0, %v1061
          %v1063 = vpop.f32.mrb[0].mxu0
          %1064 = vmatprep.mubr.bf16.mxu0 0
          %1065 = vmatmul.mubr.bf16.gmra.mrb[0].mxu0 %v954
          %v1066 = vpop.f32.mrb[0].mxu0
          %v1067 = vadd.f32 0.0, %v1066
          %v1068 = vpop.f32.mrb[0].mxu0
          %v1069 = vpop.f32.mrb[0].mxu0
          %v1070 = vadd.f32 0.0, %v1069
          %v1071 = vpop.f32.mrb[0].mxu0
          %1072 = vmatprep.mubr.bf16.mxu0 0
          %1073 = vmatmul.mubr.bf16.gmra.mrb[0].mxu0 %v955
          %v1074 = vpop.f32.mrb[0].mxu0
          %v1075 = vadd.f32 0.0, %v1074
          %v1076 = vpop.f32.mrb[0].mxu0
          %v1077 = vpop.f32.mrb[0].mxu0
          %v1078 = vadd.f32 0.0, %v1077
          %v1079 = vpop.f32.mrb[0].mxu0
          %1080 = vmatprep.mubr.bf16.mxu0 0
          %1081 = vmatmul.mubr.bf16.gmra.mrb[0].mxu0 %v956
          %v1082 = vpop.f32.mrb[0].mxu0
          %v1083 = vadd.f32 0.0, %v1082
          %v1084 = vpop.f32.mrb[0].mxu0
          %v1085 = vpop.f32.mrb[0].mxu0
          %v1086 = vadd.f32 0.0, %v1085
          %v1087 = vpop.f32.mrb[0].mxu0
          %1088 = vmatprep.mubr.bf16.mxu0 0
          %1089 = vmatmul.mubr.bf16.gmra.mrb[0].mxu0 %v957
          %v1090 = vpop.f32.mrb[0].mxu0
          %v1091 = vadd.f32 0.0, %v1090
          %v1092 = vpop.f32.mrb[0].mxu0
          %v1093 = vpop.f32.mrb[0].mxu0
          %v1094 = vadd.f32 0.0, %v1093
          %v1095 = vpop.f32.mrb[0].mxu0
          %1096 = vmatprep.mubr.bf16.mxu0 0
          %1097 = vmatmul.mubr.bf16.gmra.mrb[0].mxu0 %v958
          %v1098 = vpop.f32.mrb[0].mxu0
          %v1099 = vadd.f32 0.0, %v1098
          %v1100 = vpop.f32.mrb[0].mxu0
          %v1101 = vpop.f32.mrb[0].mxu0
          %v1102 = vadd.f32 0.0, %v1101
          %v1103 = vpop.f32.mrb[0].mxu0
          %1104 = vmatprep.mubr.bf16.mxu0 0
          %1105 = vmatmul.mubr.bf16.gmra.mrb[0].mxu0 %v959
          %v1106 = vpop.f32.mrb[0].mxu0
          %v1107 = vadd.f32 0.0, %v1106
          %v1108 = vpop.f32.mrb[0].mxu0
          %v1109 = vpop.f32.mrb[0].mxu0
          %v1110 = vadd.f32 0.0, %v1109
          %v1111 = vpop.f32.mrb[0].mxu0
          %1112 = vdwg.mxu0
          %v1129 = vunpack.c.l.b16 %v872
          %v1130 = vunpack.c.l.b16 %v873
          %v1131 = vunpack.c.l.b16 %v874
          %v1132 = vunpack.c.l.b16 %v875
          %v1133 = vunpack.c.l.b16 %v876
          %v1134 = vunpack.c.l.b16 %v877
          %v1135 = vunpack.c.l.b16 %v878
          %v1136 = vunpack.c.l.b16 %v879
          %v1137 = vunpack.c.l.b16 %v880
          %v1138 = vunpack.c.l.b16 %v881
          %v1139 = vunpack.c.l.b16 %v882
          %v1140 = vunpack.c.l.b16 %v883
          %v1141 = vunpack.c.l.b16 %v884
          %v1142 = vunpack.c.l.b16 %v885
          %v1143 = vunpack.c.l.b16 %v886
          %v1144 = vunpack.c.l.b16 %v887
          %v1145 = vpack.c.b16 %v1130, %v1129
          %v1146 = vpack.c.b16 %v1132, %v1131
          %v1147 = vpack.c.b16 %v1134, %v1133
          %v1148 = vpack.c.b16 %v1136, %v1135
          %v1149 = vpack.c.b16 %v1138, %v1137
          %v1150 = vpack.c.b16 %v1140, %v1139
          %v1151 = vpack.c.b16 %v1142, %v1141
          %v1152 = vpack.c.b16 %v1144, %v1143
          %1161 = vmatprep.subr.bf16.mxu0 0
          %1162 = vmatpush1.bf16.msra.mxu0 %v1145
          %1163 = vmatprep.subr.bf16.mxu0 0
          %1164 = vmatpush1.bf16.msra.mxu0 %v1146
          %1165 = vmatprep.subr.bf16.mxu0 0
          %1166 = vmatpush1.bf16.msra.mxu0 %v1147
          %1167 = vmatprep.subr.bf16.mxu0 0
          %1168 = vmatpush1.bf16.msra.mxu0 %v1148
          %1169 = vmatprep.subr.bf16.mxu0 0
          %1170 = vmatpush1.bf16.msra.mxu0 %v1149
          %1171 = vmatprep.subr.bf16.mxu0 0
          %1172 = vmatpush1.bf16.msra.mxu0 %v1150
          %1173 = vmatprep.subr.bf16.mxu0 0
          %1174 = vmatpush1.bf16.msra.mxu0 %v1151
          %1175 = vmatprep.subr.bf16.mxu0 0
          %1176 = vmatpush1.bf16.msra.mxu0 %v1152
          %1177 = vmatprep.subr.bf16.mxu0 0
          %1178 = vmatpush1.bf16.msra.mxu0 0
          %1179 = vmatprep.subr.bf16.mxu0 0
          %1180 = vmatpush1.bf16.msra.mxu0 0
          %1181 = vmatprep.subr.bf16.mxu0 0
          %1182 = vmatpush1.bf16.msra.mxu0 0
          %1183 = vmatprep.subr.bf16.mxu0 0
          %1184 = vmatpush1.bf16.msra.mxu0 0
          %1185 = vmatprep.subr.bf16.mxu0 0
          %1186 = vmatpush1.bf16.msra.mxu0 0
          %1187 = vmatprep.subr.bf16.mxu0 0
          %1188 = vmatpush1.bf16.msra.mxu0 0
          %1189 = vmatprep.subr.bf16.mxu0 0
          %1190 = vmatpush1.bf16.msra.mxu0 0
          %1191 = vmatprep.subr.bf16.mxu0 0
          %1192 = vmatpush1.bf16.msra.mxu0 0
          %1193 = vmatprep.mubr.bf16.mxu0 0
          %1194 = vmatmul.mubr.bf16.gmra.mrb[0].mxu0 %v864
          %v1195 = vpop.f32.mrb[0].mxu0
          %v1196 = vadd.f32 %v1051, %v1195
          %v1197 = vpop.f32.mrb[0].mxu0
          %v1198 = vpop.f32.mrb[0].mxu0
          %v1199 = vadd.f32 %v1054, %v1198
          %v1200 = vpop.f32.mrb[0].mxu0
          %1201 = vmatprep.mubr.bf16.mxu0 0
          %1202 = vmatmul.mubr.bf16.gmra.mrb[0].mxu0 %v865
          %v1203 = vpop.f32.mrb[0].mxu0
          %v1204 = vadd.f32 %v1059, %v1203
          %v1205 = vpop.f32.mrb[0].mxu0
          %v1206 = vpop.f32.mrb[0].mxu0
          %v1207 = vadd.f32 %v1062, %v1206
          %v1208 = vpop.f32.mrb[0].mxu0
          %1209 = vmatprep.mubr.bf16.mxu0 0
          %1210 = vmatmul.mubr.bf16.gmra.mrb[0].mxu0 %v866
          %v1211 = vpop.f32.mrb[0].mxu0
          %v1212 = vadd.f32 %v1067, %v1211
          %v1213 = vpop.f32.mrb[0].mxu0
          %v1214 = vpop.f32.mrb[0].mxu0
          %v1215 = vadd.f32 %v1070, %v1214
          %v1216 = vpop.f32.mrb[0].mxu0
          %1217 = vmatprep.mubr.bf16.mxu0 0
          %1218 = vmatmul.mubr.bf16.gmra.mrb[0].mxu0 %v867
          %v1219 = vpop.f32.mrb[0].mxu0
          %v1220 = vadd.f32 %v1075, %v1219
          %v1221 = vpop.f32.mrb[0].mxu0
          %v1222 = vpop.f32.mrb[0].mxu0
          %v1223 = vadd.f32 %v1078, %v1222
          %v1224 = vpop.f32.mrb[0].mxu0
          %1225 = vmatprep.mubr.bf16.mxu0 0
          %1226 = vmatmul.mubr.bf16.gmra.mrb[0].mxu0 %v868
          %v1227 = vpop.f32.mrb[0].mxu0
          %v1228 = vadd.f32 %v1083, %v1227
          %v1229 = vpop.f32.mrb[0].mxu0
          %v1230 = vpop.f32.mrb[0].mxu0
          %v1231 = vadd.f32 %v1086, %v1230
          %v1232 = vpop.f32.mrb[0].mxu0
          %1233 = vmatprep.mubr.bf16.mxu0 0
          %1234 = vmatmul.mubr.bf16.gmra.mrb[0].mxu0 %v869
          %v1235 = vpop.f32.mrb[0].mxu0
          %v1236 = vadd.f32 %v1091, %v1235
          %v1237 = vpop.f32.mrb[0].mxu0
          %v1238 = vpop.f32.mrb[0].mxu0
          %v1239 = vadd.f32 %v1094, %v1238
          %v1240 = vpop.f32.mrb[0].mxu0
          %1241 = vmatprep.mubr.bf16.mxu0 0
          %1242 = vmatmul.mubr.bf16.gmra.mrb[0].mxu0 %v870
          %v1243 = vpop.f32.mrb[0].mxu0
          %v1244 = vadd.f32 %v1099, %v1243
          %v1245 = vpop.f32.mrb[0].mxu0
          %v1246 = vpop.f32.mrb[0].mxu0
          %v1247 = vadd.f32 %v1102, %v1246
          %v1248 = vpop.f32.mrb[0].mxu0
          %1249 = vmatprep.mubr.bf16.mxu0 0
          %1250 = vmatmul.mubr.bf16.gmra.mrb[0].mxu0 %v871
          %v1251 = vpop.f32.mrb[0].mxu0
          %v1252 = vadd.f32 %v1107, %v1251
          %v1253 = vpop.f32.mrb[0].mxu0
          %v1254 = vpop.f32.mrb[0].mxu0
          %v1255 = vadd.f32 %v1110, %v1254
          %v1256 = vpop.f32.mrb[0].mxu0
          %1257 = vdwg.mxu0
          %v1258 = vmul.f32 %v1196, %v1196
          %v1259 = vmul.f32 %v1199, %v1199
          %v1260 = vmul.f32 %v1204, %v1204
          %v1261 = vmul.f32 %v1207, %v1207
          %v1262 = vmul.f32 %v1212, %v1212
          %v1263 = vmul.f32 %v1215, %v1215
          %v1264 = vmul.f32 %v1220, %v1220
          %v1265 = vmul.f32 %v1223, %v1223
          %v1266 = vmul.f32 %v1228, %v1228
          %v1267 = vmul.f32 %v1231, %v1231
          %v1268 = vmul.f32 %v1236, %v1236
          %v1269 = vmul.f32 %v1239, %v1239
          %v1270 = vmul.f32 %v1244, %v1244
          %v1271 = vmul.f32 %v1247, %v1247
          %v1272 = vmul.f32 %v1252, %v1252
          %v1273 = vmul.f32 %v1255, %v1255
          %1274 = vadd.xlane.f32.xlu0 %v1258
          %v1275 = vpop.xlane.xlu0 %1274
          %1276 = vadd.xlane.f32.xlu0 %v1259
          %v1277 = vpop.xlane.xlu0 %1276
          %1278 = vadd.xlane.f32.xlu0 %v1260
          %v1279 = vpop.xlane.xlu0 %1278
          %1280 = vadd.xlane.f32.xlu0 %v1261
          %v1281 = vpop.xlane.xlu0 %1280
          %1282 = vadd.xlane.f32.xlu0 %v1262
          %v1283 = vpop.xlane.xlu0 %1282
          %1284 = vadd.xlane.f32.xlu0 %v1263
          %v1285 = vpop.xlane.xlu0 %1284
          %1286 = vadd.xlane.f32.xlu0 %v1264
          %v1287 = vpop.xlane.xlu0 %1286
          %1288 = vadd.xlane.f32.xlu0 %v1265
          %v1289 = vpop.xlane.xlu0 %1288
          %1290 = vadd.xlane.f32.xlu0 %v1266
          %v1291 = vpop.xlane.xlu0 %1290
          %1292 = vadd.xlane.f32.xlu0 %v1267
          %v1293 = vpop.xlane.xlu0 %1292
          %1294 = vadd.xlane.f32.xlu0 %v1268
          %v1295 = vpop.xlane.xlu0 %1294
          %1296 = vadd.xlane.f32.xlu0 %v1269
          %v1297 = vpop.xlane.xlu0 %1296
          %1298 = vadd.xlane.f32.xlu0 %v1270
          %v1299 = vpop.xlane.xlu0 %1298
          %1300 = vadd.xlane.f32.xlu0 %v1271
          %v1301 = vpop.xlane.xlu0 %1300
          %1302 = vadd.xlane.f32.xlu0 %v1272
          %v1303 = vpop.xlane.xlu0 %1302
          %1304 = vadd.xlane.f32.xlu0 %v1273
          %v1305 = vpop.xlane.xlu0 %1304
          %v1306 = vmax.f32 %v1275, 1e-24
          %v1307 = vmax.f32 %v1277, 1e-24
          %v1308 = vmax.f32 %v1279, 1e-24
          %v1309 = vmax.f32 %v1281, 1e-24
          %v1310 = vmax.f32 %v1283, 1e-24
          %v1311 = vmax.f32 %v1285, 1e-24
          %v1312 = vmax.f32 %v1287, 1e-24
          %v1313 = vmax.f32 %v1289, 1e-24
          %v1314 = vmax.f32 %v1291, 1e-24
          %v1315 = vmax.f32 %v1293, 1e-24
          %v1316 = vmax.f32 %v1295, 1e-24
          %v1317 = vmax.f32 %v1297, 1e-24
          %v1318 = vmax.f32 %v1299, 1e-24
          %v1319 = vmax.f32 %v1301, 1e-24
          %v1320 = vmax.f32 %v1303, 1e-24
          %v1321 = vmax.f32 %v1305, 1e-24
          %v1322 = vrsqrt.pop %v1306
          %v1323 = vrsqrt.pop %v1307
          %v1324 = vrsqrt.pop %v1308
          %v1325 = vrsqrt.pop %v1309
          %v1326 = vrsqrt.pop %v1310
          %v1327 = vrsqrt.pop %v1311
          %v1328 = vrsqrt.pop %v1312
          %v1329 = vrsqrt.pop %v1313
          %v1330 = vrsqrt.pop %v1314
          %v1331 = vrsqrt.pop %v1315
          %v1332 = vrsqrt.pop %v1316
          %v1333 = vrsqrt.pop %v1317
          %v1334 = vrsqrt.pop %v1318
          %v1335 = vrsqrt.pop %v1319
          %v1336 = vrsqrt.pop %v1320
          %v1337 = vrsqrt.pop %v1321
          %v1338 = vmul.f32 %v1196, %v1322
          %v1339 = vmul.f32 %v1199, %v1323
          %v1340 = vmul.f32 %v1204, %v1324
          %v1341 = vmul.f32 %v1207, %v1325
          %v1342 = vmul.f32 %v1212, %v1326
          %v1343 = vmul.f32 %v1215, %v1327
          %v1344 = vmul.f32 %v1220, %v1328
          %v1345 = vmul.f32 %v1223, %v1329
          %v1346 = vmul.f32 %v1228, %v1330
          %v1347 = vmul.f32 %v1231, %v1331
          %v1348 = vmul.f32 %v1236, %v1332
          %v1349 = vmul.f32 %v1239, %v1333
          %v1350 = vmul.f32 %v1244, %v1334
          %v1351 = vmul.f32 %v1247, %v1335
          %v1352 = vmul.f32 %v1252, %v1336
          %v1353 = vmul.f32 %v1255, %v1337
          %1354 = vst [vmem:[%s436] sm:$0xff] %v1338
          %1355 = vst [vmem:[%s436 + $0x8] sm:$0xff] %v1339
          %1356 = vst [vmem:[%s436 + $0x10] sm:$0xff] %v1340
          %1357 = vst [vmem:[%s436 + $0x18] sm:$0xff] %v1341
          %1358 = vst [vmem:[%s436 + $0x20] sm:$0xff] %v1342
          %1359 = vst [vmem:[%s436 + $0x28] sm:$0xff] %v1343
          %1360 = vst [vmem:[%s436 + $0x30] sm:$0xff] %v1344
          %1361 = vst [vmem:[%s436 + $0x38] sm:$0xff] %v1345
          %1362 = vst [vmem:[%s436 + $0x40] sm:$0xff] %v1346
          %1363 = vst [vmem:[%s436 + $0x48] sm:$0xff] %v1347
          %1364 = vst [vmem:[%s436 + $0x50] sm:$0xff] %v1348
          %1365 = vst [vmem:[%s436 + $0x58] sm:$0xff] %v1349
          %1366 = vst [vmem:[%s436 + $0x60] sm:$0xff] %v1350
          %1367 = vst [vmem:[%s436 + $0x68] sm:$0xff] %v1351
          %1368 = vst [vmem:[%s436 + $0x70] sm:$0xff] %v1352
          %1369 = vst [vmem:[%s436 + $0x78] sm:$0xff] %v1353
        $region93: #{custom_sage_conv.1} parent=80 // pred_fallthru
          _
        %s1370 = smul.u32 16, %s21
        %p1371 = scmp.lt.s32.totalorder %s1370, 31
        %s1372 = scalar_select %p1371, %s1370, 31
        %s1373 = smul.addr %s1372, 8
        %s1374 = scalar_lea.vmem %s6, %s1373
        // Predicated region
        $region94: #{custom_sage_conv.1} parent=80 // pred_check
          %p1375 = pneg %p195
        $region95: #{custom_sage_conv.1} parent=80 // pred_check_branch
          %1377 = sbr.rel (%p1375) target = $region97
        $region96: #{custom_sage_conv.1} parent=80 // pred_region
          %s1378 = smul.u32 16, %s21
        $region97: #{custom_sage_conv.1} parent=80 // pred_fallthru
          _
      $region81: #{custom_sage_conv.1} parent=5 // pred_fallthru
        _
      %p1379 = scmp.le.s32.totalorder 2, %s12
      // Predicated region
      $region98: #{custom_sage_conv.1} parent=5 // pred_check
        %p1380 = pneg %p1379
      $region99: #{custom_sage_conv.1} parent=5 // pred_check_branch
        %1382 = sbr.rel (%p1380) target = $region101
      $region100: #{custom_sage_conv.1} parent=5 // pred_region
        %s1383 = ssub.s32 %s12, 2
        // Predicated region
        $region102: #{custom_sage_conv.1} parent=100 // pred_check
          %p1384 = pneg %p201
        $region103: #{custom_sage_conv.1} parent=100 // pred_check_branch
          %1386 = sbr.rel (%p1384) target = $region105
        $region104: #{custom_sage_conv.1} parent=100 // pred_region
          %s1387 = smul.u32 16, %s23
          %p1388 = scmp.lt.s32.totalorder %s1387, 31
          %s1389 = scalar_select %p1388, %s1387, 31
          %s1390 = smul.addr %s1389, 8
          %s1391 = scalar_lea.vmem %s6, %s1390
        $region105: #{custom_sage_conv.1} parent=100 // pred_fallthru
          _
      $region101: #{custom_sage_conv.1} parent=5 // pred_fallthru
        _
    $region6: #{custom_sage_conv.1} parent=1 // loop_footer
      %s16 = sadd.s32 1, %s12
    $region7: #{custom_sage_conv.1} parent=1 // loop_footer_branch
      %11 = sbr.rel target = $region3
    $region8: #{custom_sage_conv.1} parent=1 // loop_exit
      _

</llo_original>
